<compile_context>
chip_gen: v7x
topology: tpu7x:2x2x1
jax: 0.10.0
libtpu: 0.0.40
codegen_flags: <defaults>
</compile_context>

<pallas_src>
import functools

import jax
import jax.numpy as jnp
from jax.experimental import pallas as pl
from jax.experimental.pallas import tpu as pltpu


INPUT_SIZE = 1
HIDDEN_SIZES = [256, 128, 64]
OUTPUT_SIZE = 1
FC_LANE_PAD = 128                 # lane-dense slab width for the (B, 1) fc output
WEIGHT_DTYPE = jnp.bfloat16       # MXU weight dtype; gate math stays f32

_VMEM = pl.BlockSpec(memory_space=pltpu.MemorySpace.VMEM)


# ---------------------------------------------------------------------------
# Fused kernel: all GRU layers + fc + tanh in one VMEM-resident pass
# ---------------------------------------------------------------------------
def _fused_gru_fc_kernel(*refs, in_sizes, hidden_sizes, n_layers):
    """refs = [x, h_0..h_{L-1},
               (wih, whh, b_rz, b_in, b_hn) per layer,
               w_fc_pad, b_fc_pad,
               out_pad, h_new_0..h_new_{L-1}]

    Per layer (PyTorch GRUCell semantics, gate order r, z, n):
        r  = sigmoid(x W_ir + h W_hr + (b_ir + b_hr))
        z  = sigmoid(x W_iz + h W_hz + (b_iz + b_hz))
        n  = tanh   (x W_in + b_in + r * (h W_hn + b_hn))
        h' = n + z * (h - n)            # == (1 - z) * n + z * h
    Head: out = tanh(h_last @ W_fc^T + b_fc), written into a 128-lane slab.
    """
    idx = 0
    x_ref = refs[idx]; idx += 1
    h_refs = refs[idx:idx + n_layers]; idx += n_layers
    layer_refs = []
    for _ in range(n_layers):
        layer_refs.append(refs[idx:idx + 5]); idx += 5
    wfc_ref = refs[idx]; bfc_ref = refs[idx + 1]; idx += 2
    out_ref = refs[idx]; idx += 1
    h_out_refs = refs[idx:idx + n_layers]

    out = x_ref[...].astype(jnp.float32)                 # (B, in_0)

    for l in range(n_layers):
        wih_ref, whh_ref, brz_ref, bin_ref, bhn_ref = layer_refs[l]
        h = h_refs[l][...].astype(jnp.float32)           # (B, H) f32 state
        mm_dtype = whh_ref.dtype                         # bf16 (or f32) weights

        if in_sizes[l] == 1:
            # K=1 matmul is pure MXU overhead -> VPU broadcast multiply.
            w = wih_ref[...].astype(jnp.float32)         # (3, 1, H)
            gi_r = out * w[0]
            gi_z = out * w[1]
            gi_n = out * w[2]
        else:
            xin = out.astype(mm_dtype)                   # (B, in_l)
            gi_r = jnp.dot(xin, wih_ref[0], preferred_element_type=jnp.float32)
            gi_z = jnp.dot(xin, wih_ref[1], preferred_element_type=jnp.float32)
            gi_n = jnp.dot(xin, wih_ref[2], preferred_element_type=jnp.float32)

        hin = h.astype(mm_dtype)
        gh_r = jnp.dot(hin, whh_ref[0], preferred_element_type=jnp.float32)
        gh_z = jnp.dot(hin, whh_ref[1], preferred_element_type=jnp.float32)
        gh_n = jnp.dot(hin, whh_ref[2], preferred_element_type=jnp.float32)

        brz = brz_ref[...]                               # (2, 1, H) f32, pre-added
        r = jax.nn.sigmoid(gi_r + gh_r + brz[0])
        z = jax.nn.sigmoid(gi_z + gh_z + brz[1])
        n = jnp.tanh(gi_n + bin_ref[...] + r * (gh_n + bhn_ref[...]))
        h_new = n + z * (h - n)

        h_out_refs[l][...] = h_new.astype(h_out_refs[l].dtype)
        out = h_new                                      # feeds next layer (stays in VMEM)

    # Fused fc + tanh; padded weight columns are zero -> tanh(0+0)=0 in the pad.
    y = jnp.dot(out.astype(wfc_ref.dtype), wfc_ref[...],
                preferred_element_type=jnp.float32) + bfc_ref[...]
    out_ref[...] = jnp.tanh(y).astype(out_ref.dtype)


# ---------------------------------------------------------------------------
# Parameter init (PyTorch-style) and one-time re-layout for the kernel
# ---------------------------------------------------------------------------
def init_params(key, input_size, hidden_sizes, output_size):
    """PyTorch-layout parameters: w_ih (3H, in), w_hh (3H, H), b_* (3H,)."""
    gru_params = []
    for i, hidden in enumerate(hidden_sizes):
        in_size = input_size if i == 0 else hidden_sizes[i - 1]
        bound = 1.0 / (hidden ** 0.5)
        key, k0, k1, k2, k3 = jax.random.split(key, 5)
        w_ih = jax.random.uniform(k0, (3 * hidden, in_size), jnp.float32, -bound, bound)
        w_hh = jax.random.uniform(k1, (3 * hidden, hidden), jnp.float32, -bound, bound)
        b_ih = jax.random.uniform(k2, (3 * hidden,), jnp.float32, -bound, bound)
        b_hh = jax.random.uniform(k3, (3 * hidden,), jnp.float32, -bound, bound)
        gru_params.append((w_ih, w_hh, b_ih, b_hh))

    bound = 1.0 / (hidden_sizes[-1] ** 0.5)
    key, k0, k1 = jax.random.split(key, 3)
    w_fc = jax.random.uniform(k0, (output_size, hidden_sizes[-1]), jnp.float32, -bound, bound)
    b_fc = jax.random.uniform(k1, (output_size,), jnp.float32, -bound, bound)
    return gru_params, (w_fc, b_fc)


def prepare_params(gru_params, fc_params, weight_dtype=WEIGHT_DTYPE):
    """One-time re-layout (hoisted out of the forward path):
    gate-major transposed weights, pre-added r/z biases, lane-padded fc."""
    flat = []
    for (w_ih, w_hh, b_ih, b_hh), hidden in zip(gru_params, HIDDEN_SIZES):
        in_size = w_ih.shape[1]
        wih = jnp.transpose(w_ih.reshape(3, hidden, in_size), (0, 2, 1)).astype(weight_dtype)
        whh = jnp.transpose(w_hh.reshape(3, hidden, hidden), (0, 2, 1)).astype(weight_dtype)
        bih = b_ih.reshape(3, 1, hidden).astype(jnp.float32)
        bhh = b_hh.reshape(3, 1, hidden).astype(jnp.float32)
        b_rz = bih[0:2] + bhh[0:2]          # (2, 1, H) pre-added r/z biases
        b_in = bih[2]                       # (1, H)
        b_hn = bhh[2]                       # (1, H)
        flat.extend([wih, whh, b_rz, b_in, b_hn])

    w_fc, b_fc = fc_params
    out_f = w_fc.shape[0]
    w_fc_t = jnp.transpose(w_fc).astype(weight_dtype)          # (H_last, out)
    w_fc_pad = jnp.zeros((w_fc_t.shape[0], FC_LANE_PAD), weight_dtype)
    w_fc_pad = w_fc_pad.at[:, :out_f].set(w_fc_t)
    b_fc_pad = jnp.zeros((1, FC_LANE_PAD), jnp.float32)
    b_fc_pad = b_fc_pad.at[:, :out_f].set(b_fc.astype(jnp.float32))
    flat.extend([w_fc_pad, b_fc_pad])
    return tuple(flat)


# ---------------------------------------------------------------------------
# Forward: matches CustomGRUModel.forward -> (output, new_h_states)
# ---------------------------------------------------------------------------
@jax.jit
def custom_gru_forward(prepared, input_t, h_states):
    batch = input_t.shape[0]
    n_layers = len(HIDDEN_SIZES)
    in_sizes = tuple([INPUT_SIZE] + HIDDEN_SIZES[:-1])

    kernel = functools.partial(
        _fused_gru_fc_kernel,
        in_sizes=in_sizes,
        hidden_sizes=tuple(HIDDEN_SIZES),
        n_layers=n_layers,
    )

    out_shapes = (
        jax.ShapeDtypeStruct((batch, FC_LANE_PAD), jnp.float32),
        *[jax.ShapeDtypeStruct((batch, h), jnp.float32) for h in HIDDEN_SIZES],
    )
    n_inputs = 1 + n_layers + len(prepared)

    outs = pl.pallas_call(
        kernel,
        out_shape=out_shapes,
        in_specs=[_VMEM] * n_inputs,
        out_specs=tuple([_VMEM] * (1 + n_layers)),
    )(input_t, *h_states, *prepared)

    out_pad = outs[0]
    new_h_states = list(outs[1:])
    return out_pad[:, :OUTPUT_SIZE], new_h_states
    # TODO(synk): if driven by a long time loop, move timesteps onto a Pallas
    # grid / in-kernel fori_loop so the ~1 MB of weights stays VMEM-resident
    # across steps instead of being re-fetched per call.


if __name__ == "__main__":
    key = jax.random.PRNGKey(0)
    k_params, k_x, k_h = jax.random.split(key, 3)

    gru_params, fc_params = init_params(k_params, INPUT_SIZE, HIDDEN_SIZES, OUTPUT_SIZE)
    prepared = prepare_params(gru_params, fc_params)

    batch = 2
    input_t = jax.random.normal(k_x, (batch, INPUT_SIZE), jnp.float32)
    hkeys = jax.random.split(k_h, len(HIDDEN_SIZES))
    h_states = [jax.random.normal(hk, (batch, hs), jnp.float32)
                for hk, hs in zip(hkeys, HIDDEN_SIZES)]

    output, new_h_states = custom_gru_forward(prepared, input_t, h_states)
    jax.block_until_ready(output)
    for h in new_h_states:
        jax.block_until_ready(h)

    assert output.shape == (batch, OUTPUT_SIZE)
    assert [h.shape for h in new_h_states] == [(batch, hs) for hs in HIDDEN_SIZES]
    assert bool(jnp.all(jnp.isfinite(output)))
    print("KERNEL_OK")
</pallas_src>

<mosaic_0001>
module attributes {stable_mosaic.version = 11 : i64} {
  func.func @_fused_gru_fc_kernel(%arg0: memref<2x1xf32, #tpu.memory_space<vmem>>, %arg1: memref<2x256xf32, #tpu.memory_space<vmem>>, %arg2: memref<2x128xf32, #tpu.memory_space<vmem>>, %arg3: memref<2x64xf32, #tpu.memory_space<vmem>>, %arg4: memref<3x1x256xbf16, #tpu.memory_space<vmem>>, %arg5: memref<3x256x256xbf16, #tpu.memory_space<vmem>>, %arg6: memref<2x1x256xf32, #tpu.memory_space<vmem>>, %arg7: memref<1x256xf32, #tpu.memory_space<vmem>>, %arg8: memref<1x256xf32, #tpu.memory_space<vmem>>, %arg9: memref<3x256x128xbf16, #tpu.memory_space<vmem>>, %arg10: memref<3x128x128xbf16, #tpu.memory_space<vmem>>, %arg11: memref<2x1x128xf32, #tpu.memory_space<vmem>>, %arg12: memref<1x128xf32, #tpu.memory_space<vmem>>, %arg13: memref<1x128xf32, #tpu.memory_space<vmem>>, %arg14: memref<3x128x64xbf16, #tpu.memory_space<vmem>>, %arg15: memref<3x64x64xbf16, #tpu.memory_space<vmem>>, %arg16: memref<2x1x64xf32, #tpu.memory_space<vmem>>, %arg17: memref<1x64xf32, #tpu.memory_space<vmem>>, %arg18: memref<1x64xf32, #tpu.memory_space<vmem>>, %arg19: memref<64x128xbf16, #tpu.memory_space<vmem>>, %arg20: memref<1x128xf32, #tpu.memory_space<vmem>>, %arg21: memref<2x128xf32, #tpu.memory_space<vmem>>, %arg22: memref<2x256xf32, #tpu.memory_space<vmem>>, %arg23: memref<2x128xf32, #tpu.memory_space<vmem>>, %arg24: memref<2x64xf32, #tpu.memory_space<vmem>>) attributes {dimension_semantics = [], scalar_prefetch = 0 : i64, scratch_operands = 0 : i64, tpu.core_type = #tpu.core_type<tc>} {
    %c0 = arith.constant 0 : index
    %c0_0 = arith.constant 0 : index
    %0 = vector.load %arg0[%c0, %c0_0] : memref<2x1xf32, #tpu.memory_space<vmem>>, vector<2x1xf32>
    %c0_1 = arith.constant 0 : index
    %c0_2 = arith.constant 0 : index
    %1 = vector.load %arg1[%c0_1, %c0_2] : memref<2x256xf32, #tpu.memory_space<vmem>>, vector<2x256xf32>
    %c0_3 = arith.constant 0 : index
    %c0_4 = arith.constant 0 : index
    %c0_5 = arith.constant 0 : index
    %2 = vector.load %arg4[%c0_3, %c0_4, %c0_5] : memref<3x1x256xbf16, #tpu.memory_space<vmem>>, vector<3x1x256xbf16>
    %3 = arith.extf %2 : vector<3x1x256xbf16> to vector<3x1x256xf32>
    %4 = vector.extract_strided_slice %3 {offsets = [0, 0, 0], sizes = [1, 1, 256], strides = [1, 1, 1]} : vector<3x1x256xf32> to vector<1x1x256xf32>
    %5 = vector.shape_cast %4 : vector<1x1x256xf32> to vector<1x256xf32>
    %6 = vector.broadcast %0 : vector<2x1xf32> to vector<2x256xf32>
    %7 = vector.broadcast %5 : vector<1x256xf32> to vector<2x256xf32>
    %8 = arith.mulf %6, %7 : vector<2x256xf32>
    %9 = vector.extract_strided_slice %3 {offsets = [1, 0, 0], sizes = [1, 1, 256], strides = [1, 1, 1]} : vector<3x1x256xf32> to vector<1x1x256xf32>
    %10 = vector.shape_cast %9 : vector<1x1x256xf32> to vector<1x256xf32>
    %11 = vector.broadcast %0 : vector<2x1xf32> to vector<2x256xf32>
    %12 = vector.broadcast %10 : vector<1x256xf32> to vector<2x256xf32>
    %13 = arith.mulf %11, %12 : vector<2x256xf32>
    %14 = vector.extract_strided_slice %3 {offsets = [2, 0, 0], sizes = [1, 1, 256], strides = [1, 1, 1]} : vector<3x1x256xf32> to vector<1x1x256xf32>
    %15 = vector.shape_cast %14 : vector<1x1x256xf32> to vector<1x256xf32>
    %16 = vector.broadcast %0 : vector<2x1xf32> to vector<2x256xf32>
    %17 = vector.broadcast %15 : vector<1x256xf32> to vector<2x256xf32>
    %18 = arith.mulf %16, %17 : vector<2x256xf32>
    %19 = arith.truncf %1 : vector<2x256xf32> to vector<2x256xbf16>
    %c0_6 = arith.constant 0 : index
    %c0_7 = arith.constant 0 : index
    %c0_8 = arith.constant 0 : index
    %20 = vector.load %arg5[%c0_6, %c0_7, %c0_8] : memref<3x256x256xbf16, #tpu.memory_space<vmem>>, vector<1x256x256xbf16>
    %21 = vector.shape_cast %20 : vector<1x256x256xbf16> to vector<256x256xbf16>
    %cst = arith.constant dense<0.000000e+00> : vector<2x256xf32>
    %22 = tpu.matmul %19, %21, %cst {dimension_numbers = #tpu.dot_dimension_numbers<[1], [0], [0], [1], [0, 0, 1, 1], [], []>} : vector<2x256xbf16>, vector<256x256xbf16>, vector<2x256xf32> -> vector<2x256xf32>
    %c1 = arith.constant 1 : index
    %c0_9 = arith.constant 0 : index
    %c0_10 = arith.constant 0 : index
    %23 = vector.load %arg5[%c1, %c0_9, %c0_10] : memref<3x256x256xbf16, #tpu.memory_space<vmem>>, vector<1x256x256xbf16>
    %24 = vector.shape_cast %23 : vector<1x256x256xbf16> to vector<256x256xbf16>
    %cst_11 = arith.constant dense<0.000000e+00> : vector<2x256xf32>
    %25 = tpu.matmul %19, %24, %cst_11 {dimension_numbers = #tpu.dot_dimension_numbers<[1], [0], [0], [1], [0, 0, 1, 1], [], []>} : vector<2x256xbf16>, vector<256x256xbf16>, vector<2x256xf32> -> vector<2x256xf32>
    %c2 = arith.constant 2 : index
    %c0_12 = arith.constant 0 : index
    %c0_13 = arith.constant 0 : index
    %26 = vector.load %arg5[%c2, %c0_12, %c0_13] : memref<3x256x256xbf16, #tpu.memory_space<vmem>>, vector<1x256x256xbf16>
    %27 = vector.shape_cast %26 : vector<1x256x256xbf16> to vector<256x256xbf16>
    %cst_14 = arith.constant dense<0.000000e+00> : vector<2x256xf32>
    %28 = tpu.matmul %19, %27, %cst_14 {dimension_numbers = #tpu.dot_dimension_numbers<[1], [0], [0], [1], [0, 0, 1, 1], [], []>} : vector<2x256xbf16>, vector<256x256xbf16>, vector<2x256xf32> -> vector<2x256xf32>
    %c0_15 = arith.constant 0 : index
    %c0_16 = arith.constant 0 : index
    %c0_17 = arith.constant 0 : index
    %29 = vector.load %arg6[%c0_15, %c0_16, %c0_17] : memref<2x1x256xf32, #tpu.memory_space<vmem>>, vector<2x1x256xf32>
    %30 = arith.addf %8, %22 : vector<2x256xf32>
    %31 = vector.extract_strided_slice %29 {offsets = [0, 0, 0], sizes = [1, 1, 256], strides = [1, 1, 1]} : vector<2x1x256xf32> to vector<1x1x256xf32>
    %32 = vector.shape_cast %31 : vector<1x1x256xf32> to vector<1x256xf32>
    %33 = vector.broadcast %32 : vector<1x256xf32> to vector<2x256xf32>
    %34 = arith.addf %30, %33 : vector<2x256xf32>
    %35 = arith.negf %34 : vector<2x256xf32>
    %36 = math.exp %35 : vector<2x256xf32>
    %cst_18 = arith.constant 1.000000e+00 : f32
    %37 = vector.broadcast %cst_18 : f32 to vector<2x256xf32>
    %38 = arith.addf %37, %36 : vector<2x256xf32>
    %39 = arith.divf %37, %38 : vector<2x256xf32>
    %40 = arith.addf %13, %25 : vector<2x256xf32>
    %41 = vector.extract_strided_slice %29 {offsets = [1, 0, 0], sizes = [1, 1, 256], strides = [1, 1, 1]} : vector<2x1x256xf32> to vector<1x1x256xf32>
    %42 = vector.shape_cast %41 : vector<1x1x256xf32> to vector<1x256xf32>
    %43 = vector.broadcast %42 : vector<1x256xf32> to vector<2x256xf32>
    %44 = arith.addf %40, %43 : vector<2x256xf32>
    %45 = arith.negf %44 : vector<2x256xf32>
    %46 = math.exp %45 : vector<2x256xf32>
    %cst_19 = arith.constant 1.000000e+00 : f32
    %47 = vector.broadcast %cst_19 : f32 to vector<2x256xf32>
    %48 = arith.addf %47, %46 : vector<2x256xf32>
    %49 = arith.divf %47, %48 : vector<2x256xf32>
    %c0_20 = arith.constant 0 : index
    %c0_21 = arith.constant 0 : index
    %50 = vector.load %arg7[%c0_20, %c0_21] : memref<1x256xf32, #tpu.memory_space<vmem>>, vector<1x256xf32>
    %51 = vector.broadcast %50 : vector<1x256xf32> to vector<2x256xf32>
    %52 = arith.addf %18, %51 : vector<2x256xf32>
    %c0_22 = arith.constant 0 : index
    %c0_23 = arith.constant 0 : index
    %53 = vector.load %arg8[%c0_22, %c0_23] : memref<1x256xf32, #tpu.memory_space<vmem>>, vector<1x256xf32>
    %54 = vector.broadcast %53 : vector<1x256xf32> to vector<2x256xf32>
    %55 = arith.addf %28, %54 : vector<2x256xf32>
    %56 = arith.mulf %39, %55 : vector<2x256xf32>
    %57 = arith.addf %52, %56 : vector<2x256xf32>
    %58 = math.tanh %57 : vector<2x256xf32>
    %59 = arith.subf %1, %58 : vector<2x256xf32>
    %60 = arith.mulf %49, %59 : vector<2x256xf32>
    %61 = arith.addf %58, %60 : vector<2x256xf32>
    %c0_24 = arith.constant 0 : index
    %c0_25 = arith.constant 0 : index
    %62 = vector.load %arg22[%c0_24, %c0_25] : memref<2x256xf32, #tpu.memory_space<vmem>>, vector<2x256xf32>
    tpu.vector_store %arg22[%c0_24, %c0_25], %61 {strides = array<i32>} : memref<2x256xf32, #tpu.memory_space<vmem>>, vector<2x256xf32>,
    %c0_26 = arith.constant 0 : index
    %c0_27 = arith.constant 0 : index
    %63 = vector.load %arg2[%c0_26, %c0_27] : memref<2x128xf32, #tpu.memory_space<vmem>>, vector<2x128xf32>
    %64 = arith.truncf %61 : vector<2x256xf32> to vector<2x256xbf16>
    %c0_28 = arith.constant 0 : index
    %c0_29 = arith.constant 0 : index
    %c0_30 = arith.constant 0 : index
    %65 = vector.load %arg9[%c0_28, %c0_29, %c0_30] : memref<3x256x128xbf16, #tpu.memory_space<vmem>>, vector<1x256x128xbf16>
    %66 = vector.shape_cast %65 : vector<1x256x128xbf16> to vector<256x128xbf16>
    %cst_31 = arith.constant dense<0.000000e+00> : vector<2x128xf32>
    %67 = tpu.matmul %64, %66, %cst_31 {dimension_numbers = #tpu.dot_dimension_numbers<[1], [0], [0], [1], [0, 0, 1, 1], [], []>} : vector<2x256xbf16>, vector<256x128xbf16>, vector<2x128xf32> -> vector<2x128xf32>
    %c1_32 = arith.constant 1 : index
    %c0_33 = arith.constant 0 : index
    %c0_34 = arith.constant 0 : index
    %68 = vector.load %arg9[%c1_32, %c0_33, %c0_34] : memref<3x256x128xbf16, #tpu.memory_space<vmem>>, vector<1x256x128xbf16>
    %69 = vector.shape_cast %68 : vector<1x256x128xbf16> to vector<256x128xbf16>
    %cst_35 = arith.constant dense<0.000000e+00> : vector<2x128xf32>
    %70 = tpu.matmul %64, %69, %cst_35 {dimension_numbers = #tpu.dot_dimension_numbers<[1], [0], [0], [1], [0, 0, 1, 1], [], []>} : vector<2x256xbf16>, vector<256x128xbf16>, vector<2x128xf32> -> vector<2x128xf32>
    %c2_36 = arith.constant 2 : index
    %c0_37 = arith.constant 0 : index
    %c0_38 = arith.constant 0 : index
    %71 = vector.load %arg9[%c2_36, %c0_37, %c0_38] : memref<3x256x128xbf16, #tpu.memory_space<vmem>>, vector<1x256x128xbf16>
    %72 = vector.shape_cast %71 : vector<1x256x128xbf16> to vector<256x128xbf16>
    %cst_39 = arith.constant dense<0.000000e+00> : vector<2x128xf32>
    %73 = tpu.matmul %64, %72, %cst_39 {dimension_numbers = #tpu.dot_dimension_numbers<[1], [0], [0], [1], [0, 0, 1, 1], [], []>} : vector<2x256xbf16>, vector<256x128xbf16>, vector<2x128xf32> -> vector<2x128xf32>
    %74 = arith.truncf %63 : vector<2x128xf32> to vector<2x128xbf16>
    %c0_40 = arith.constant 0 : index
    %c0_41 = arith.constant 0 : index
    %c0_42 = arith.constant 0 : index
    %75 = vector.load %arg10[%c0_40, %c0_41, %c0_42] : memref<3x128x128xbf16, #tpu.memory_space<vmem>>, vector<1x128x128xbf16>
    %76 = vector.shape_cast %75 : vector<1x128x128xbf16> to vector<128x128xbf16>
    %cst_43 = arith.constant dense<0.000000e+00> : vector<2x128xf32>
    %77 = tpu.matmul %74, %76, %cst_43 {dimension_numbers = #tpu.dot_dimension_numbers<[1], [0], [0], [1], [0, 0, 1, 1], [], []>} : vector<2x128xbf16>, vector<128x128xbf16>, vector<2x128xf32> -> vector<2x128xf32>
    %c1_44 = arith.constant 1 : index
    %c0_45 = arith.constant 0 : index
    %c0_46 = arith.constant 0 : index
    %78 = vector.load %arg10[%c1_44, %c0_45, %c0_46] : memref<3x128x128xbf16, #tpu.memory_space<vmem>>, vector<1x128x128xbf16>
    %79 = vector.shape_cast %78 : vector<1x128x128xbf16> to vector<128x128xbf16>
    %cst_47 = arith.constant dense<0.000000e+00> : vector<2x128xf32>
    %80 = tpu.matmul %74, %79, %cst_47 {dimension_numbers = #tpu.dot_dimension_numbers<[1], [0], [0], [1], [0, 0, 1, 1], [], []>} : vector<2x128xbf16>, vector<128x128xbf16>, vector<2x128xf32> -> vector<2x128xf32>
    %c2_48 = arith.constant 2 : index
    %c0_49 = arith.constant 0 : index
    %c0_50 = arith.constant 0 : index
    %81 = vector.load %arg10[%c2_48, %c0_49, %c0_50] : memref<3x128x128xbf16, #tpu.memory_space<vmem>>, vector<1x128x128xbf16>
    %82 = vector.shape_cast %81 : vector<1x128x128xbf16> to vector<128x128xbf16>
    %cst_51 = arith.constant dense<0.000000e+00> : vector<2x128xf32>
    %83 = tpu.matmul %74, %82, %cst_51 {dimension_numbers = #tpu.dot_dimension_numbers<[1], [0], [0], [1], [0, 0, 1, 1], [], []>} : vector<2x128xbf16>, vector<128x128xbf16>, vector<2x128xf32> -> vector<2x128xf32>
    %c0_52 = arith.constant 0 : index
    %c0_53 = arith.constant 0 : index
    %c0_54 = arith.constant 0 : index
    %84 = vector.load %arg11[%c0_52, %c0_53, %c0_54] : memref<2x1x128xf32, #tpu.memory_space<vmem>>, vector<2x1x128xf32>
    %85 = arith.addf %67, %77 : vector<2x128xf32>
    %86 = vector.extract_strided_slice %84 {offsets = [0, 0, 0], sizes = [1, 1, 128], strides = [1, 1, 1]} : vector<2x1x128xf32> to vector<1x1x128xf32>
    %87 = vector.shape_cast %86 : vector<1x1x128xf32> to vector<1x128xf32>
    %88 = vector.broadcast %87 : vector<1x128xf32> to vector<2x128xf32>
    %89 = arith.addf %85, %88 : vector<2x128xf32>
    %90 = arith.negf %89 : vector<2x128xf32>
    %91 = math.exp %90 : vector<2x128xf32>
    %cst_55 = arith.constant 1.000000e+00 : f32
    %92 = vector.broadcast %cst_55 : f32 to vector<2x128xf32>
    %93 = arith.addf %92, %91 : vector<2x128xf32>
    %94 = arith.divf %92, %93 : vector<2x128xf32>
    %95 = arith.addf %70, %80 : vector<2x128xf32>
    %96 = vector.extract_strided_slice %84 {offsets = [1, 0, 0], sizes = [1, 1, 128], strides = [1, 1, 1]} : vector<2x1x128xf32> to vector<1x1x128xf32>
    %97 = vector.shape_cast %96 : vector<1x1x128xf32> to vector<1x128xf32>
    %98 = vector.broadcast %97 : vector<1x128xf32> to vector<2x128xf32>
    %99 = arith.addf %95, %98 : vector<2x128xf32>
    %100 = arith.negf %99 : vector<2x128xf32>
    %101 = math.exp %100 : vector<2x128xf32>
    %cst_56 = arith.constant 1.000000e+00 : f32
    %102 = vector.broadcast %cst_56 : f32 to vector<2x128xf32>
    %103 = arith.addf %102, %101 : vector<2x128xf32>
    %104 = arith.divf %102, %103 : vector<2x128xf32>
    %c0_57 = arith.constant 0 : index
    %c0_58 = arith.constant 0 : index
    %105 = vector.load %arg12[%c0_57, %c0_58] : memref<1x128xf32, #tpu.memory_space<vmem>>, vector<1x128xf32>
    %106 = vector.broadcast %105 : vector<1x128xf32> to vector<2x128xf32>
    %107 = arith.addf %73, %106 : vector<2x128xf32>
    %c0_59 = arith.constant 0 : index
    %c0_60 = arith.constant 0 : index
    %108 = vector.load %arg13[%c0_59, %c0_60] : memref<1x128xf32, #tpu.memory_space<vmem>>, vector<1x128xf32>
    %109 = vector.broadcast %108 : vector<1x128xf32> to vector<2x128xf32>
    %110 = arith.addf %83, %109 : vector<2x128xf32>
    %111 = arith.mulf %94, %110 : vector<2x128xf32>
    %112 = arith.addf %107, %111 : vector<2x128xf32>
    %113 = math.tanh %112 : vector<2x128xf32>
    %114 = arith.subf %63, %113 : vector<2x128xf32>
    %115 = arith.mulf %104, %114 : vector<2x128xf32>
    %116 = arith.addf %113, %115 : vector<2x128xf32>
    %c0_61 = arith.constant 0 : index
    %c0_62 = arith.constant 0 : index
    %117 = vector.load %arg23[%c0_61, %c0_62] : memref<2x128xf32, #tpu.memory_space<vmem>>, vector<2x128xf32>
    tpu.vector_store %arg23[%c0_61, %c0_62], %116 {strides = array<i32>} : memref<2x128xf32, #tpu.memory_space<vmem>>, vector<2x128xf32>,
    %c0_63 = arith.constant 0 : index
    %c0_64 = arith.constant 0 : index
    %118 = vector.load %arg3[%c0_63, %c0_64] : memref<2x64xf32, #tpu.memory_space<vmem>>, vector<2x64xf32>
    %119 = arith.truncf %116 : vector<2x128xf32> to vector<2x128xbf16>
    %c0_65 = arith.constant 0 : index
    %c0_66 = arith.constant 0 : index
    %c0_67 = arith.constant 0 : index
    %120 = vector.load %arg14[%c0_65, %c0_66, %c0_67] : memref<3x128x64xbf16, #tpu.memory_space<vmem>>, vector<1x128x64xbf16>
    %121 = vector.shape_cast %120 : vector<1x128x64xbf16> to vector<128x64xbf16>
    %cst_68 = arith.constant dense<0.000000e+00> : vector<2x64xf32>
    %122 = tpu.matmul %119, %121, %cst_68 {dimension_numbers = #tpu.dot_dimension_numbers<[1], [0], [0], [1], [0, 0, 1, 1], [], []>} : vector<2x128xbf16>, vector<128x64xbf16>, vector<2x64xf32> -> vector<2x64xf32>
    %c1_69 = arith.constant 1 : index
    %c0_70 = arith.constant 0 : index
    %c0_71 = arith.constant 0 : index
    %123 = vector.load %arg14[%c1_69, %c0_70, %c0_71] : memref<3x128x64xbf16, #tpu.memory_space<vmem>>, vector<1x128x64xbf16>
    %124 = vector.shape_cast %123 : vector<1x128x64xbf16> to vector<128x64xbf16>
    %cst_72 = arith.constant dense<0.000000e+00> : vector<2x64xf32>
    %125 = tpu.matmul %119, %124, %cst_72 {dimension_numbers = #tpu.dot_dimension_numbers<[1], [0], [0], [1], [0, 0, 1, 1], [], []>} : vector<2x128xbf16>, vector<128x64xbf16>, vector<2x64xf32> -> vector<2x64xf32>
    %c2_73 = arith.constant 2 : index
    %c0_74 = arith.constant 0 : index
    %c0_75 = arith.constant 0 : index
    %126 = vector.load %arg14[%c2_73, %c0_74, %c0_75] : memref<3x128x64xbf16, #tpu.memory_space<vmem>>, vector<1x128x64xbf16>
    %127 = vector.shape_cast %126 : vector<1x128x64xbf16> to vector<128x64xbf16>
    %cst_76 = arith.constant dense<0.000000e+00> : vector<2x64xf32>
    %128 = tpu.matmul %119, %127, %cst_76 {dimension_numbers = #tpu.dot_dimension_numbers<[1], [0], [0], [1], [0, 0, 1, 1], [], []>} : vector<2x128xbf16>, vector<128x64xbf16>, vector<2x64xf32> -> vector<2x64xf32>
    %129 = arith.truncf %118 : vector<2x64xf32> to vector<2x64xbf16>
    %c0_77 = arith.constant 0 : index
    %c0_78 = arith.constant 0 : index
    %c0_79 = arith.constant 0 : index
    %130 = vector.load %arg15[%c0_77, %c0_78, %c0_79] : memref<3x64x64xbf16, #tpu.memory_space<vmem>>, vector<1x64x64xbf16>
    %131 = vector.shape_cast %130 : vector<1x64x64xbf16> to vector<64x64xbf16>
    %cst_80 = arith.constant dense<0.000000e+00> : vector<2x64xf32>
    %132 = tpu.matmul %129, %131, %cst_80 {dimension_numbers = #tpu.dot_dimension_numbers<[1], [0], [0], [1], [0, 0, 1, 1], [], []>} : vector<2x64xbf16>, vector<64x64xbf16>, vector<2x64xf32> -> vector<2x64xf32>
    %c1_81 = arith.constant 1 : index
    %c0_82 = arith.constant 0 : index
    %c0_83 = arith.constant 0 : index
    %133 = vector.load %arg15[%c1_81, %c0_82, %c0_83] : memref<3x64x64xbf16, #tpu.memory_space<vmem>>, vector<1x64x64xbf16>
    %134 = vector.shape_cast %133 : vector<1x64x64xbf16> to vector<64x64xbf16>
    %cst_84 = arith.constant dense<0.000000e+00> : vector<2x64xf32>
    %135 = tpu.matmul %129, %134, %cst_84 {dimension_numbers = #tpu.dot_dimension_numbers<[1], [0], [0], [1], [0, 0, 1, 1], [], []>} : vector<2x64xbf16>, vector<64x64xbf16>, vector<2x64xf32> -> vector<2x64xf32>
    %c2_85 = arith.constant 2 : index
    %c0_86 = arith.constant 0 : index
    %c0_87 = arith.constant 0 : index
    %136 = vector.load %arg15[%c2_85, %c0_86, %c0_87] : memref<3x64x64xbf16, #tpu.memory_space<vmem>>, vector<1x64x64xbf16>
    %137 = vector.shape_cast %136 : vector<1x64x64xbf16> to vector<64x64xbf16>
    %cst_88 = arith.constant dense<0.000000e+00> : vector<2x64xf32>
    %138 = tpu.matmul %129, %137, %cst_88 {dimension_numbers = #tpu.dot_dimension_numbers<[1], [0], [0], [1], [0, 0, 1, 1], [], []>} : vector<2x64xbf16>, vector<64x64xbf16>, vector<2x64xf32> -> vector<2x64xf32>
    %c0_89 = arith.constant 0 : index
    %c0_90 = arith.constant 0 : index
    %c0_91 = arith.constant 0 : index
    %139 = vector.load %arg16[%c0_89, %c0_90, %c0_91] : memref<2x1x64xf32, #tpu.memory_space<vmem>>, vector<2x1x64xf32>
    %140 = arith.addf %122, %132 : vector<2x64xf32>
    %141 = vector.extract_strided_slice %139 {offsets = [0, 0, 0], sizes = [1, 1, 64], strides = [1, 1, 1]} : vector<2x1x64xf32> to vector<1x1x64xf32>
    %142 = vector.shape_cast %141 : vector<1x1x64xf32> to vector<1x64xf32>
    %143 = vector.broadcast %142 : vector<1x64xf32> to vector<2x64xf32>
    %144 = arith.addf %140, %143 : vector<2x64xf32>
    %145 = arith.negf %144 : vector<2x64xf32>
    %146 = math.exp %145 : vector<2x64xf32>
    %cst_92 = arith.constant 1.000000e+00 : f32
    %147 = vector.broadcast %cst_92 : f32 to vector<2x64xf32>
    %148 = arith.addf %147, %146 : vector<2x64xf32>
    %149 = arith.divf %147, %148 : vector<2x64xf32>
    %150 = arith.addf %125, %135 : vector<2x64xf32>
    %151 = vector.extract_strided_slice %139 {offsets = [1, 0, 0], sizes = [1, 1, 64], strides = [1, 1, 1]} : vector<2x1x64xf32> to vector<1x1x64xf32>
    %152 = vector.shape_cast %151 : vector<1x1x64xf32> to vector<1x64xf32>
    %153 = vector.broadcast %152 : vector<1x64xf32> to vector<2x64xf32>
    %154 = arith.addf %150, %153 : vector<2x64xf32>
    %155 = arith.negf %154 : vector<2x64xf32>
    %156 = math.exp %155 : vector<2x64xf32>
    %cst_93 = arith.constant 1.000000e+00 : f32
    %157 = vector.broadcast %cst_93 : f32 to vector<2x64xf32>
    %158 = arith.addf %157, %156 : vector<2x64xf32>
    %159 = arith.divf %157, %158 : vector<2x64xf32>
    %c0_94 = arith.constant 0 : index
    %c0_95 = arith.constant 0 : index
    %160 = vector.load %arg17[%c0_94, %c0_95] : memref<1x64xf32, #tpu.memory_space<vmem>>, vector<1x64xf32>
    %161 = vector.broadcast %160 : vector<1x64xf32> to vector<2x64xf32>
    %162 = arith.addf %128, %161 : vector<2x64xf32>
    %c0_96 = arith.constant 0 : index
    %c0_97 = arith.constant 0 : index
    %163 = vector.load %arg18[%c0_96, %c0_97] : memref<1x64xf32, #tpu.memory_space<vmem>>, vector<1x64xf32>
    %164 = vector.broadcast %163 : vector<1x64xf32> to vector<2x64xf32>
    %165 = arith.addf %138, %164 : vector<2x64xf32>
    %166 = arith.mulf %149, %165 : vector<2x64xf32>
    %167 = arith.addf %162, %166 : vector<2x64xf32>
    %168 = math.tanh %167 : vector<2x64xf32>
    %169 = arith.subf %118, %168 : vector<2x64xf32>
    %170 = arith.mulf %159, %169 : vector<2x64xf32>
    %171 = arith.addf %168, %170 : vector<2x64xf32>
    %c0_98 = arith.constant 0 : index
    %c0_99 = arith.constant 0 : index
    %172 = vector.load %arg24[%c0_98, %c0_99] : memref<2x64xf32, #tpu.memory_space<vmem>>, vector<2x64xf32>
    tpu.vector_store %arg24[%c0_98, %c0_99], %171 {strides = array<i32>} : memref<2x64xf32, #tpu.memory_space<vmem>>, vector<2x64xf32>,
    %173 = arith.truncf %171 : vector<2x64xf32> to vector<2x64xbf16>
    %c0_100 = arith.constant 0 : index
    %c0_101 = arith.constant 0 : index
    %174 = vector.load %arg19[%c0_100, %c0_101] : memref<64x128xbf16, #tpu.memory_space<vmem>>, vector<64x128xbf16>
    %cst_102 = arith.constant dense<0.000000e+00> : vector<2x128xf32>
    %175 = tpu.matmul %173, %174, %cst_102 {dimension_numbers = #tpu.dot_dimension_numbers<[1], [0], [0], [1], [0, 0, 1, 1], [], []>} : vector<2x64xbf16>, vector<64x128xbf16>, vector<2x128xf32> -> vector<2x128xf32>
    %c0_103 = arith.constant 0 : index
    %c0_104 = arith.constant 0 : index
    %176 = vector.load %arg20[%c0_103, %c0_104] : memref<1x128xf32, #tpu.memory_space<vmem>>, vector<1x128xf32>
    %177 = vector.broadcast %176 : vector<1x128xf32> to vector<2x128xf32>
    %178 = arith.addf %175, %177 : vector<2x128xf32>
    %179 = math.tanh %178 : vector<2x128xf32>
    %c0_105 = arith.constant 0 : index
    %c0_106 = arith.constant 0 : index
    %180 = vector.load %arg21[%c0_105, %c0_106] : memref<2x128xf32, #tpu.memory_space<vmem>>, vector<2x128xf32>
    tpu.vector_store %arg21[%c0_105, %c0_106], %179 {strides = array<i32>} : memref<2x128xf32, #tpu.memory_space<vmem>>, vector<2x128xf32>,
    return
  }
}

</mosaic_0001>

<llo_original>
// kernel: custom_gru_forward.1
$region0: #{custom_gru_forward.1}
  #allocation0 [shape = 'u32[]', space=smem, size = 0x4, offset = 0x4, fixed_abs, tag = 'smem constant byte address 0x4 - core index']
  #allocation1 [shape = 'u32[144,128]{1,0:T(1,128)}', space=vmem, size = 0x12000, scoped, tag = 'internal scratch']
  %s0 = inlined_call_operand.vmem [shape: f32[2,1], index: 0, kind: input, shape index: {}]
  %s1 = inlined_call_operand.vmem [shape: f32[2,256], index: 1, kind: input, shape index: {}]
  %s2 = inlined_call_operand.vmem [shape: f32[2,128], index: 2, kind: input, shape index: {}]
  %s3 = inlined_call_operand.vmem [shape: f32[2,64], index: 3, kind: input, shape index: {}]
  %s4 = inlined_call_operand.vmem [shape: bf16[3,1,256], index: 4, kind: input, shape index: {}]
  %s5 = inlined_call_operand.hbm [shape: bf16[3,256,256], index: 5, kind: input, shape index: {}]
  %s6 = inlined_call_operand.hbm [shape: f32[2,1,256], index: 6, kind: input, shape index: {}]
  %s7 = inlined_call_operand.hbm [shape: f32[1,256], index: 7, kind: input, shape index: {}]
  %s8 = inlined_call_operand.hbm [shape: f32[1,256], index: 8, kind: input, shape index: {}]
  %s9 = inlined_call_operand.hbm [shape: bf16[3,256,128], index: 9, kind: input, shape index: {}]
  %s10 = inlined_call_operand.vmem [shape: bf16[3,128,128], index: 10, kind: input, shape index: {}]
  %s11 = inlined_call_operand.hbm [shape: f32[2,1,128], index: 11, kind: input, shape index: {}]
  %s12 = inlined_call_operand.vmem [shape: f32[1,128], index: 12, kind: input, shape index: {}]
  %s13 = inlined_call_operand.vmem [shape: f32[1,128], index: 13, kind: input, shape index: {}]
  %s14 = inlined_call_operand.vmem [shape: bf16[3,128,64], index: 14, kind: input, shape index: {}]
  %s15 = inlined_call_operand.vmem [shape: bf16[3,64,64], index: 15, kind: input, shape index: {}]
  %s16 = inlined_call_operand.vmem [shape: f32[2,1,64], index: 16, kind: input, shape index: {}]
  %s17 = inlined_call_operand.vmem [shape: f32[1,64], index: 17, kind: input, shape index: {}]
  %s18 = inlined_call_operand.vmem [shape: f32[1,64], index: 18, kind: input, shape index: {}]
  %s19 = inlined_call_operand.vmem [shape: bf16[64,128], index: 19, kind: input, shape index: {}]
  %s20 = inlined_call_operand.vmem [shape: f32[1,128], index: 20, kind: input, shape index: {}]
  %s21 = inlined_call_operand.vmem [shape: f32[2,128], index: 21, kind: output, shape index: {0}]
  %s22 = inlined_call_operand.hbm [shape: f32[2,256], index: 22, kind: output, shape index: {1}]
  %s23 = inlined_call_operand.hbm [shape: f32[2,128], index: 23, kind: output, shape index: {2}]
  %s24 = inlined_call_operand.hbm [shape: f32[2,64], index: 24, kind: output, shape index: {3}]
  %25 = xla_tuple %s21, %s22, %s23, %s24
  %s26 = sld [smem:[#allocation0]]
  $region142: #{custom_gru_forward.1} parent=0
    _
  %s28 = ssub.s32 1, %s26
  %s29 = scalar_select 0, %s28, %s26
  $region1: #{custom_gru_forward.1} parent=0
    #allocation2 [shape = 'u8[393216]{0}', space=vmem, size = 0x60000, scoped, tag = 'input window, operand 5, single buffered']
    #allocation3 [shape = 's32[1]{0}', space=sflag, size = 0x4, scoped, tag = 'scoped memory for custom_gru_forward.1']
    #allocation4 [shape = 's32[1]{0}', space=sflag, size = 0x4, scoped, tag = 'scoped memory for custom_gru_forward.1']
    #allocation5 [shape = 'u8[2048]{0}', space=vmem, size = 0x800, scoped, tag = 'input window, operand 6, single buffered']
    #allocation6 [shape = 's32[1]{0}', space=sflag, size = 0x4, scoped, tag = 'scoped memory for custom_gru_forward.1']
    #allocation7 [shape = 'u8[1024]{0}', space=vmem, size = 0x400, scoped, tag = 'input window, operand 7, single buffered']
    #allocation8 [shape = 'u8[1024]{0}', space=vmem, size = 0x400, scoped, tag = 'input window, operand 8, single buffered']
    #allocation9 [shape = 's32[1]{0}', space=sflag, size = 0x4, scoped, tag = 'scoped memory for custom_gru_forward.1']
    #allocation10 [shape = 'u8[196608]{0}', space=vmem, size = 0x30000, scoped, tag = 'input window, operand 9, single buffered']
    #allocation11 [shape = 'u8[1024]{0}', space=vmem, size = 0x400, scoped, tag = 'input window, operand 11, single buffered']
    #allocation12 [shape = 's32[1]{0}', space=sflag, size = 0x4, scoped, tag = 'scoped memory for custom_gru_forward.1']
    #allocation13 [shape = 'u8[2048]{0}', space=vmem, size = 0x800, scoped, tag = 'output window, operand 1, single buffered']
    #allocation14 [shape = 'u8[1024]{0}', space=vmem, size = 0x400, scoped, tag = 'output window, operand 2, single buffered']
    #allocation15 [shape = 's32[1]{0}', space=sflag, size = 0x4, scoped, tag = 'scoped memory for custom_gru_forward.1']
    #allocation16 [shape = 'u8[1024]{0}', space=vmem, size = 0x400, scoped, tag = 'output window, operand 3, single buffered']
    %30 = vsyncpa [#allocation3], 0
    %31 = vsyncpa [#allocation6], 0
    %32 = vsyncpa [#allocation9], 0
    %33 = vsyncpa [#allocation12], 0
    %34 = vsyncpa [#allocation4], 0
    %35 = vsyncpa [#allocation15], 0
    // Predicated region
    $region2: #{custom_gru_forward.1} parent=1 // pred_check
      _
    $region3: #{custom_gru_forward.1} parent=1 // pred_check_branch
      %37 = sbr.rel (0) target = $region5
    $region4: #{custom_gru_forward.1} parent=1 // pred_region
      _
    $region5: #{custom_gru_forward.1} parent=1 // pred_fallthru
      _
    // Predicated region
    $region6: #{custom_gru_forward.1} parent=1 // pred_check
      _
    $region7: #{custom_gru_forward.1} parent=1 // pred_check_branch
      %39 = sbr.rel (0) target = $region9
    $region8: #{custom_gru_forward.1} parent=1 // pred_region
      _
    $region9: #{custom_gru_forward.1} parent=1 // pred_fallthru
      _
    // Predicated region
    $region10: #{custom_gru_forward.1} parent=1 // pred_check
      _
    $region11: #{custom_gru_forward.1} parent=1 // pred_check_branch
      %41 = sbr.rel (0) target = $region13
    $region12: #{custom_gru_forward.1} parent=1 // pred_region
      _
    $region13: #{custom_gru_forward.1} parent=1 // pred_fallthru
      _
    // Predicated region
    $region14: #{custom_gru_forward.1} parent=1 // pred_check
      _
    $region15: #{custom_gru_forward.1} parent=1 // pred_check_branch
      %43 = sbr.rel (0) target = $region17
    $region16: #{custom_gru_forward.1} parent=1 // pred_region
      _
    $region17: #{custom_gru_forward.1} parent=1 // pred_fallthru
      _
    // Predicated region
    $region18: #{custom_gru_forward.1} parent=1 // pred_check
      _
    $region19: #{custom_gru_forward.1} parent=1 // pred_check_branch
      %45 = sbr.rel (0) target = $region21
    $region20: #{custom_gru_forward.1} parent=1 // pred_region
      _
    $region21: #{custom_gru_forward.1} parent=1 // pred_fallthru
      _
    // Predicated region
    $region22: #{custom_gru_forward.1} parent=1 // pred_check
      _
    $region23: #{custom_gru_forward.1} parent=1 // pred_check_branch
      %47 = sbr.rel (0) target = $region25
    $region24: #{custom_gru_forward.1} parent=1 // pred_region
      %s49 = ssub.s32 12288, 12288
      %50 = vsyncadd [#allocation3], %s49
      %s51 = sshll.u32 [#allocation2], 4
      %s52 = int_to_ptr.vmem [resolvable:$true] %s51
      %57 = dma.hbm_to_vmem [thread:$0]  %s5, 12288, %s52, [#allocation3], 128, 128, 8
    $region25: #{custom_gru_forward.1} parent=1 // pred_fallthru
      _
    // Predicated region
    $region26: #{custom_gru_forward.1} parent=1 // pred_check
      _
    $region27: #{custom_gru_forward.1} parent=1 // pred_check_branch
      %59 = sbr.rel (0) target = $region29
    $region28: #{custom_gru_forward.1} parent=1 // pred_region
      %s61 = ssub.s32 64, 64
      %62 = vsyncadd [#allocation6], %s61
      %s63 = sshll.u32 [#allocation5], 4
      %s64 = int_to_ptr.vmem [resolvable:$true] %s63
      %69 = dma.hbm_to_vmem [thread:$0]  %s6, 64, %s64, [#allocation6], 32, 32, 2
    $region29: #{custom_gru_forward.1} parent=1 // pred_fallthru
      _
    // Predicated region
    $region30: #{custom_gru_forward.1} parent=1 // pred_check
      _
    $region31: #{custom_gru_forward.1} parent=1 // pred_check_branch
      %71 = sbr.rel (0) target = $region33
    $region32: #{custom_gru_forward.1} parent=1 // pred_region
      %s73 = ssub.s32 32, 32
      %74 = vsyncadd [#allocation6], %s73
      %s76 = sshll.u32 [#allocation7], 4
      %s77 = int_to_ptr.vmem [resolvable:$true] %s76
      %79 = dma.hbm_to_vmem [thread:$0]  %s7, 32, %s77, [#allocation6]
    $region33: #{custom_gru_forward.1} parent=1 // pred_fallthru
      _
    // Predicated region
    $region34: #{custom_gru_forward.1} parent=1 // pred_check
      _
    $region35: #{custom_gru_forward.1} parent=1 // pred_check_branch
      %81 = sbr.rel (0) target = $region37
    $region36: #{custom_gru_forward.1} parent=1 // pred_region
      %s83 = ssub.s32 32, 32
      %84 = vsyncadd [#allocation9], %s83
      %s86 = sshll.u32 [#allocation8], 4
      %s87 = int_to_ptr.vmem [resolvable:$true] %s86
      %89 = dma.hbm_to_vmem [thread:$0]  %s8, 32, %s87, [#allocation9]
    $region37: #{custom_gru_forward.1} parent=1 // pred_fallthru
      _
    // Predicated region
    $region38: #{custom_gru_forward.1} parent=1 // pred_check
      _
    $region39: #{custom_gru_forward.1} parent=1 // pred_check_branch
      %91 = sbr.rel (0) target = $region41
    $region40: #{custom_gru_forward.1} parent=1 // pred_region
      %s93 = ssub.s32 6144, 6144
      %94 = vsyncadd [#allocation9], %s93
      %s95 = sshll.u32 [#allocation10], 4
      %s96 = int_to_ptr.vmem [resolvable:$true] %s95
      %101 = dma.hbm_to_vmem [thread:$0]  %s9, 6144, %s96, [#allocation9], 64, 64, 4
    $region41: #{custom_gru_forward.1} parent=1 // pred_fallthru
      _
    // Predicated region
    $region42: #{custom_gru_forward.1} parent=1 // pred_check
      _
    $region43: #{custom_gru_forward.1} parent=1 // pred_check_branch
      %103 = sbr.rel (0) target = $region45
    $region44: #{custom_gru_forward.1} parent=1 // pred_region
      _
    $region45: #{custom_gru_forward.1} parent=1 // pred_fallthru
      _
    // Predicated region
    $region46: #{custom_gru_forward.1} parent=1 // pred_check
      _
    $region47: #{custom_gru_forward.1} parent=1 // pred_check_branch
      %105 = sbr.rel (0) target = $region49
    $region48: #{custom_gru_forward.1} parent=1 // pred_region
      %s107 = ssub.s32 32, 32
      %108 = vsyncadd [#allocation12], %s107
      %s109 = sshll.u32 [#allocation11], 4
      %s110 = int_to_ptr.vmem [resolvable:$true] %s109
      %115 = dma.hbm_to_vmem [thread:$0]  %s11, 32, %s110, [#allocation12], 16, 16, 1
    $region49: #{custom_gru_forward.1} parent=1 // pred_fallthru
      _
    // Predicated region
    $region50: #{custom_gru_forward.1} parent=1 // pred_check
      _
    $region51: #{custom_gru_forward.1} parent=1 // pred_check_branch
      %117 = sbr.rel (0) target = $region53
    $region52: #{custom_gru_forward.1} parent=1 // pred_region
      _
    $region53: #{custom_gru_forward.1} parent=1 // pred_fallthru
      _
    // Predicated region
    $region54: #{custom_gru_forward.1} parent=1 // pred_check
      _
    $region55: #{custom_gru_forward.1} parent=1 // pred_check_branch
      %119 = sbr.rel (0) target = $region57
    $region56: #{custom_gru_forward.1} parent=1 // pred_region
      _
    $region57: #{custom_gru_forward.1} parent=1 // pred_fallthru
      _
    // Predicated region
    $region58: #{custom_gru_forward.1} parent=1 // pred_check
      _
    $region59: #{custom_gru_forward.1} parent=1 // pred_check_branch
      %121 = sbr.rel (0) target = $region61
    $region60: #{custom_gru_forward.1} parent=1 // pred_region
      _
    $region61: #{custom_gru_forward.1} parent=1 // pred_fallthru
      _
    // Predicated region
    $region62: #{custom_gru_forward.1} parent=1 // pred_check
      _
    $region63: #{custom_gru_forward.1} parent=1 // pred_check_branch
      %123 = sbr.rel (0) target = $region65
    $region64: #{custom_gru_forward.1} parent=1 // pred_region
      _
    $region65: #{custom_gru_forward.1} parent=1 // pred_fallthru
      _
    // Predicated region
    $region66: #{custom_gru_forward.1} parent=1 // pred_check
      _
    $region67: #{custom_gru_forward.1} parent=1 // pred_check_branch
      %125 = sbr.rel (0) target = $region69
    $region68: #{custom_gru_forward.1} parent=1 // pred_region
      _
    $region69: #{custom_gru_forward.1} parent=1 // pred_fallthru
      _
    // Predicated region
    $region70: #{custom_gru_forward.1} parent=1 // pred_check
      _
    $region71: #{custom_gru_forward.1} parent=1 // pred_check_branch
      %127 = sbr.rel (0) target = $region73
    $region72: #{custom_gru_forward.1} parent=1 // pred_region
      _
    $region73: #{custom_gru_forward.1} parent=1 // pred_fallthru
      _
    // Predicated region
    $region74: #{custom_gru_forward.1} parent=1 // pred_check
      _
    $region75: #{custom_gru_forward.1} parent=1 // pred_check_branch
      %129 = sbr.rel (0) target = $region77
    $region76: #{custom_gru_forward.1} parent=1 // pred_region
      _
    $region77: #{custom_gru_forward.1} parent=1 // pred_fallthru
      _
    // Predicated region
    $region78: #{custom_gru_forward.1} parent=1 // pred_check
      _
    $region79: #{custom_gru_forward.1} parent=1 // pred_check_branch
      %131 = sbr.rel (0) target = $region81
    $region80: #{custom_gru_forward.1} parent=1 // pred_region
      _
    $region81: #{custom_gru_forward.1} parent=1 // pred_fallthru
      _
    // Predicated region
    $region82: #{custom_gru_forward.1} parent=1 // pred_check
      _
    $region83: #{custom_gru_forward.1} parent=1 // pred_check_branch
      %133 = sbr.rel (0) target = $region85
    $region84: #{custom_gru_forward.1} parent=1 // pred_region
      _
    $region85: #{custom_gru_forward.1} parent=1 // pred_fallthru
      _
    // Predicated region
    $region86: #{custom_gru_forward.1} parent=1 // pred_check
      _
    $region87: #{custom_gru_forward.1} parent=1 // pred_check_branch
      %135 = sbr.rel (0) target = $region89
    $region88: #{custom_gru_forward.1} parent=1 // pred_region
      %136 = dma.done [#allocation3], 12288
    $region89: #{custom_gru_forward.1} parent=1 // pred_fallthru
      _
    // Predicated region
    $region90: #{custom_gru_forward.1} parent=1 // pred_check
      _
    $region91: #{custom_gru_forward.1} parent=1 // pred_check_branch
      %138 = sbr.rel (0) target = $region93
    $region92: #{custom_gru_forward.1} parent=1 // pred_region
      %139 = dma.done [#allocation6], 64
    $region93: #{custom_gru_forward.1} parent=1 // pred_fallthru
      _
    // Predicated region
    $region94: #{custom_gru_forward.1} parent=1 // pred_check
      _
    $region95: #{custom_gru_forward.1} parent=1 // pred_check_branch
      %141 = sbr.rel (0) target = $region97
    $region96: #{custom_gru_forward.1} parent=1 // pred_region
      %142 = dma.done [#allocation6], 32
    $region97: #{custom_gru_forward.1} parent=1 // pred_fallthru
      _
    // Predicated region
    $region98: #{custom_gru_forward.1} parent=1 // pred_check
      _
    $region99: #{custom_gru_forward.1} parent=1 // pred_check_branch
      %144 = sbr.rel (0) target = $region101
    $region100: #{custom_gru_forward.1} parent=1 // pred_region
      %145 = dma.done [#allocation9], 32
    $region101: #{custom_gru_forward.1} parent=1 // pred_fallthru
      _
    // Predicated region
    $region102: #{custom_gru_forward.1} parent=1 // pred_check
      _
    $region103: #{custom_gru_forward.1} parent=1 // pred_check_branch
      %147 = sbr.rel (0) target = $region105
    $region104: #{custom_gru_forward.1} parent=1 // pred_region
      %148 = dma.done [#allocation9], 6144
    $region105: #{custom_gru_forward.1} parent=1 // pred_fallthru
      _
    // Predicated region
    $region106: #{custom_gru_forward.1} parent=1 // pred_check
      _
    $region107: #{custom_gru_forward.1} parent=1 // pred_check_branch
      %150 = sbr.rel (0) target = $region109
    $region108: #{custom_gru_forward.1} parent=1 // pred_region
      %151 = dma.done [#allocation12], 32
    $region109: #{custom_gru_forward.1} parent=1 // pred_fallthru
      _
    %v153 = vld [vmem:[%s0] sm:$0x3]
    %v154 = vld [vmem:[%s1] sm:$0xf]
    %v155 = vld [vmem:[%s4] sm:$0x3]
    %v156 = vld [vmem:[%s4 + $0x2] sm:$0x3]
    %v157 = vld [vmem:[%s4 + $0x4] sm:$0x3]
    %v158 = vunpack.c.l.bf16 %v155
    %v159 = vunpack.c.l.bf16 %v156
    %v160 = vunpack.c.l.bf16 %v157
    %162 = vset.pattern.permute.xlu0 0
    %163 = vperm.xlu0 %162, %v153
    %v164 = vpop.permute.xlu0 %163
    %v167 = vlaneseq
    %v168 = vshrl.u32 %v167, 7
    %v169 = vsub.s32 0, %v168
    %v170 = vrot.slane %v158, %v169
    %v171 = vlaneseq
    %v172 = vshrl.u32 %v171, 7
    %v173 = vsub.s32 2, %v172
    %v174 = vrot.slane %v158, %v173
    %v177 = vlaneseq
    %v178 = vshrl.u32 %v177, 7
    %v179 = vsub.s32 0, %v178
    %v180 = vrot.slane %v170, %v179
    %v181 = vlaneseq
    %v182 = vshrl.u32 %v181, 7
    %v183 = vsub.s32 0, %v182
    %v184 = vrot.slane %v174, %v183
    %v185 = vmul.f32 %v164, %v180
    %v186 = vmul.f32 %v164, %v184
    %v188 = vlaneseq
    %v189 = vshrl.u32 %v188, 7
    %v190 = vsub.s32 0, %v189
    %v191 = vrot.slane %v159, %v190
    %v192 = vlaneseq
    %v193 = vshrl.u32 %v192, 7
    %v194 = vsub.s32 2, %v193
    %v195 = vrot.slane %v159, %v194
    %v198 = vlaneseq
    %v199 = vshrl.u32 %v198, 7
    %v200 = vsub.s32 0, %v199
    %v201 = vrot.slane %v191, %v200
    %v202 = vlaneseq
    %v203 = vshrl.u32 %v202, 7
    %v204 = vsub.s32 0, %v203
    %v205 = vrot.slane %v195, %v204
    %v206 = vmul.f32 %v164, %v201
    %v207 = vmul.f32 %v164, %v205
    %v209 = vlaneseq
    %v210 = vshrl.u32 %v209, 7
    %v211 = vsub.s32 0, %v210
    %v212 = vrot.slane %v160, %v211
    %v213 = vlaneseq
    %v214 = vshrl.u32 %v213, 7
    %v215 = vsub.s32 2, %v214
    %v216 = vrot.slane %v160, %v215
    %v219 = vlaneseq
    %v220 = vshrl.u32 %v219, 7
    %v221 = vsub.s32 0, %v220
    %v222 = vrot.slane %v212, %v221
    %v223 = vlaneseq
    %v224 = vshrl.u32 %v223, 7
    %v225 = vsub.s32 0, %v224
    %v226 = vrot.slane %v216, %v225
    %v227 = vmul.f32 %v164, %v222
    %v228 = vmul.f32 %v164, %v226
    %v231 = vunpack.c.l.s4 1983009808
    %v232 = vunpack.c.0.s8 %v231
    %v233 = vlaneseq
    %v234 = vshrl.u32 %v233, 7
    %v235 = vsub.s32 %v232, %v234
    %v236 = vrot.slane %v154, %v235
    %v237 = vcombine.high %v236, %v236
    %v240 = vpack.c.bf16 %v236, %v236
    %v241 = vpack.c.bf16 %v237, %v237
    %v242 = vld [vmem:[#allocation2] sm:$0xff]
    %v243 = vld [vmem:[#allocation2 + $0x8] sm:$0xff]
    %v244 = vld [vmem:[#allocation2 + $0x10] sm:$0xff]
    %v245 = vld [vmem:[#allocation2 + $0x18] sm:$0xff]
    %v246 = vld [vmem:[#allocation2 + $0x20] sm:$0xff]
    %v247 = vld [vmem:[#allocation2 + $0x28] sm:$0xff]
    %v248 = vld [vmem:[#allocation2 + $0x30] sm:$0xff]
    %v249 = vld [vmem:[#allocation2 + $0x38] sm:$0xff]
    %v250 = vld [vmem:[#allocation2 + $0x40] sm:$0xff]
    %v251 = vld [vmem:[#allocation2 + $0x48] sm:$0xff]
    %v252 = vld [vmem:[#allocation2 + $0x50] sm:$0xff]
    %v253 = vld [vmem:[#allocation2 + $0x58] sm:$0xff]
    %v254 = vld [vmem:[#allocation2 + $0x60] sm:$0xff]
    %v255 = vld [vmem:[#allocation2 + $0x68] sm:$0xff]
    %v256 = vld [vmem:[#allocation2 + $0x70] sm:$0xff]
    %v257 = vld [vmem:[#allocation2 + $0x78] sm:$0xff]
    %v258 = vld [vmem:[#allocation2 + $0x80] sm:$0xff]
    %v259 = vld [vmem:[#allocation2 + $0x88] sm:$0xff]
    %v260 = vld [vmem:[#allocation2 + $0x90] sm:$0xff]
    %v261 = vld [vmem:[#allocation2 + $0x98] sm:$0xff]
    %v262 = vld [vmem:[#allocation2 + $0xa0] sm:$0xff]
    %v263 = vld [vmem:[#allocation2 + $0xa8] sm:$0xff]
    %v264 = vld [vmem:[#allocation2 + $0xb0] sm:$0xff]
    %v265 = vld [vmem:[#allocation2 + $0xb8] sm:$0xff]
    %v266 = vld [vmem:[#allocation2 + $0xc0] sm:$0xff]
    %v267 = vld [vmem:[#allocation2 + $0xc8] sm:$0xff]
    %v268 = vld [vmem:[#allocation2 + $0xd0] sm:$0xff]
    %v269 = vld [vmem:[#allocation2 + $0xd8] sm:$0xff]
    %v270 = vld [vmem:[#allocation2 + $0xe0] sm:$0xff]
    %v271 = vld [vmem:[#allocation2 + $0xe8] sm:$0xff]
    %v272 = vld [vmem:[#allocation2 + $0xf0] sm:$0xff]
    %v273 = vld [vmem:[#allocation2 + $0xf8] sm:$0xff]
    %v306 = vunpack.c.l.b16 %v242
    %v307 = vunpack.c.h.b16 %v242
    %v308 = vunpack.c.l.b16 %v243
    %v309 = vunpack.c.h.b16 %v243
    %v310 = vunpack.c.l.b16 %v244
    %v311 = vunpack.c.h.b16 %v244
    %v312 = vunpack.c.l.b16 %v245
    %v313 = vunpack.c.h.b16 %v245
    %v314 = vunpack.c.l.b16 %v246
    %v315 = vunpack.c.h.b16 %v246
    %v316 = vunpack.c.l.b16 %v247
    %v317 = vunpack.c.h.b16 %v247
    %v318 = vunpack.c.l.b16 %v248
    %v319 = vunpack.c.h.b16 %v248
    %v320 = vunpack.c.l.b16 %v249
    %v321 = vunpack.c.h.b16 %v249
    %v322 = vunpack.c.l.b16 %v250
    %v323 = vunpack.c.h.b16 %v250
    %v324 = vunpack.c.l.b16 %v251
    %v325 = vunpack.c.h.b16 %v251
    %v326 = vunpack.c.l.b16 %v252
    %v327 = vunpack.c.h.b16 %v252
    %v328 = vunpack.c.l.b16 %v253
    %v329 = vunpack.c.h.b16 %v253
    %v330 = vunpack.c.l.b16 %v254
    %v331 = vunpack.c.h.b16 %v254
    %v332 = vunpack.c.l.b16 %v255
    %v333 = vunpack.c.h.b16 %v255
    %v334 = vunpack.c.l.b16 %v256
    %v335 = vunpack.c.h.b16 %v256
    %v336 = vunpack.c.l.b16 %v257
    %v337 = vunpack.c.h.b16 %v257
    %v338 = vunpack.c.l.b16 %v258
    %v339 = vunpack.c.h.b16 %v258
    %v340 = vunpack.c.l.b16 %v259
    %v341 = vunpack.c.h.b16 %v259
    %v342 = vunpack.c.l.b16 %v260
    %v343 = vunpack.c.h.b16 %v260
    %v344 = vunpack.c.l.b16 %v261
    %v345 = vunpack.c.h.b16 %v261
    %v346 = vunpack.c.l.b16 %v262
    %v347 = vunpack.c.h.b16 %v262
    %v348 = vunpack.c.l.b16 %v263
    %v349 = vunpack.c.h.b16 %v263
    %v350 = vunpack.c.l.b16 %v264
    %v351 = vunpack.c.h.b16 %v264
    %v352 = vunpack.c.l.b16 %v265
    %v353 = vunpack.c.h.b16 %v265
    %v354 = vunpack.c.l.b16 %v266
    %v355 = vunpack.c.h.b16 %v266
    %v356 = vunpack.c.l.b16 %v267
    %v357 = vunpack.c.h.b16 %v267
    %v358 = vunpack.c.l.b16 %v268
    %v359 = vunpack.c.h.b16 %v268
    %v360 = vunpack.c.l.b16 %v269
    %v361 = vunpack.c.h.b16 %v269
    %v362 = vunpack.c.l.b16 %v270
    %v363 = vunpack.c.h.b16 %v270
    %v364 = vunpack.c.l.b16 %v271
    %v365 = vunpack.c.h.b16 %v271
    %v366 = vunpack.c.l.b16 %v272
    %v367 = vunpack.c.h.b16 %v272
    %v368 = vunpack.c.l.b16 %v273
    %v369 = vunpack.c.h.b16 %v273
    %v370 = vpack.c.b16 %v308, %v306
    %v371 = vpack.c.b16 %v309, %v307
    %v372 = vpack.c.b16 %v312, %v310
    %v373 = vpack.c.b16 %v313, %v311
    %v374 = vpack.c.b16 %v316, %v314
    %v375 = vpack.c.b16 %v317, %v315
    %v376 = vpack.c.b16 %v320, %v318
    %v377 = vpack.c.b16 %v321, %v319
    %v378 = vpack.c.b16 %v324, %v322
    %v379 = vpack.c.b16 %v325, %v323
    %v380 = vpack.c.b16 %v328, %v326
    %v381 = vpack.c.b16 %v329, %v327
    %v382 = vpack.c.b16 %v332, %v330
    %v383 = vpack.c.b16 %v333, %v331
    %v384 = vpack.c.b16 %v336, %v334
    %v385 = vpack.c.b16 %v337, %v335
    %v386 = vpack.c.b16 %v340, %v338
    %v387 = vpack.c.b16 %v341, %v339
    %v388 = vpack.c.b16 %v344, %v342
    %v389 = vpack.c.b16 %v345, %v343
    %v390 = vpack.c.b16 %v348, %v346
    %v391 = vpack.c.b16 %v349, %v347
    %v392 = vpack.c.b16 %v352, %v350
    %v393 = vpack.c.b16 %v353, %v351
    %v394 = vpack.c.b16 %v356, %v354
    %v395 = vpack.c.b16 %v357, %v355
    %v396 = vpack.c.b16 %v360, %v358
    %v397 = vpack.c.b16 %v361, %v359
    %v398 = vpack.c.b16 %v364, %v362
    %v399 = vpack.c.b16 %v365, %v363
    %v400 = vpack.c.b16 %v368, %v366
    %v401 = vpack.c.b16 %v369, %v367
    %434 = vmatprep.subr.bf16.mxu0 %v371
    %435 = vmatpush1.bf16.msra.mxu0 %v370
    %436 = vmatprep.subr.bf16.mxu0 %v373
    %437 = vmatpush1.bf16.msra.mxu0 %v372
    %438 = vmatprep.subr.bf16.mxu0 %v375
    %439 = vmatpush1.bf16.msra.mxu0 %v374
    %440 = vmatprep.subr.bf16.mxu0 %v377
    %441 = vmatpush1.bf16.msra.mxu0 %v376
    %442 = vmatprep.subr.bf16.mxu0 %v379
    %443 = vmatpush1.bf16.msra.mxu0 %v378
    %444 = vmatprep.subr.bf16.mxu0 %v381
    %445 = vmatpush1.bf16.msra.mxu0 %v380
    %446 = vmatprep.subr.bf16.mxu0 %v383
    %447 = vmatpush1.bf16.msra.mxu0 %v382
    %448 = vmatprep.subr.bf16.mxu0 %v385
    %449 = vmatpush1.bf16.msra.mxu0 %v384
    %450 = vmatprep.subr.bf16.mxu0 %v387
    %451 = vmatpush1.bf16.msra.mxu0 %v386
    %452 = vmatprep.subr.bf16.mxu0 %v389
    %453 = vmatpush1.bf16.msra.mxu0 %v388
    %454 = vmatprep.subr.bf16.mxu0 %v391
    %455 = vmatpush1.bf16.msra.mxu0 %v390
    %456 = vmatprep.subr.bf16.mxu0 %v393
    %457 = vmatpush1.bf16.msra.mxu0 %v392
    %458 = vmatprep.subr.bf16.mxu0 %v395
    %459 = vmatpush1.bf16.msra.mxu0 %v394
    %460 = vmatprep.subr.bf16.mxu0 %v397
    %461 = vmatpush1.bf16.msra.mxu0 %v396
    %462 = vmatprep.subr.bf16.mxu0 %v399
    %463 = vmatpush1.bf16.msra.mxu0 %v398
    %464 = vmatprep.subr.bf16.mxu0 %v401
    %465 = vmatpush1.bf16.msra.mxu0 %v400
    %466 = vmatprep.mubr.bf16.mxu0 %v241
    %467 = vmatmul.mubr.bf16.gmra.mrb[0].mxu0 %v240
    %v468 = vpop.f32.mrb[0].mxu0
    %v469 = vadd.f32 0.0, %v468
    %v470 = vpop.f32.mrb[0].mxu0
    %v471 = vadd.f32 0.0, %v470
    %v472 = vpop.f32.mrb[0].mxu0
    %v473 = vpop.f32.mrb[0].mxu0
    %474 = vdwg.mxu0
    %s475 = scalar_lea.vmem [#allocation2], 256
    %v476 = vld [vmem:[%s475] sm:$0xff]
    %v477 = vld [vmem:[%s475 + $0x8] sm:$0xff]
    %v478 = vld [vmem:[%s475 + $0x10] sm:$0xff]
    %v479 = vld [vmem:[%s475 + $0x18] sm:$0xff]
    %v480 = vld [vmem:[%s475 + $0x20] sm:$0xff]
    %v481 = vld [vmem:[%s475 + $0x28] sm:$0xff]
    %v482 = vld [vmem:[%s475 + $0x30] sm:$0xff]
    %v483 = vld [vmem:[%s475 + $0x38] sm:$0xff]
    %v484 = vld [vmem:[%s475 + $0x40] sm:$0xff]
    %v485 = vld [vmem:[%s475 + $0x48] sm:$0xff]
    %v486 = vld [vmem:[%s475 + $0x50] sm:$0xff]
    %v487 = vld [vmem:[%s475 + $0x58] sm:$0xff]
    %v488 = vld [vmem:[%s475 + $0x60] sm:$0xff]
    %v489 = vld [vmem:[%s475 + $0x68] sm:$0xff]
    %v490 = vld [vmem:[%s475 + $0x70] sm:$0xff]
    %v491 = vld [vmem:[%s475 + $0x78] sm:$0xff]
    %v492 = vld [vmem:[%s475 + $0x80] sm:$0xff]
    %v493 = vld [vmem:[%s475 + $0x88] sm:$0xff]
    %v494 = vld [vmem:[%s475 + $0x90] sm:$0xff]
    %v495 = vld [vmem:[%s475 + $0x98] sm:$0xff]
    %v496 = vld [vmem:[%s475 + $0xa0] sm:$0xff]
    %v497 = vld [vmem:[%s475 + $0xa8] sm:$0xff]
    %v498 = vld [vmem:[%s475 + $0xb0] sm:$0xff]
    %v499 = vld [vmem:[%s475 + $0xb8] sm:$0xff]
    %v500 = vld [vmem:[%s475 + $0xc0] sm:$0xff]
    %v501 = vld [vmem:[%s475 + $0xc8] sm:$0xff]
    %v502 = vld [vmem:[%s475 + $0xd0] sm:$0xff]
    %v503 = vld [vmem:[%s475 + $0xd8] sm:$0xff]
    %v504 = vld [vmem:[%s475 + $0xe0] sm:$0xff]
    %v505 = vld [vmem:[%s475 + $0xe8] sm:$0xff]
    %v506 = vld [vmem:[%s475 + $0xf0] sm:$0xff]
    %v507 = vld [vmem:[%s475 + $0xf8] sm:$0xff]
    %v540 = vunpack.c.l.b16 %v476
    %v541 = vunpack.c.h.b16 %v476
    %v542 = vunpack.c.l.b16 %v477
    %v543 = vunpack.c.h.b16 %v477
    %v544 = vunpack.c.l.b16 %v478
    %v545 = vunpack.c.h.b16 %v478
    %v546 = vunpack.c.l.b16 %v479
    %v547 = vunpack.c.h.b16 %v479
    %v548 = vunpack.c.l.b16 %v480
    %v549 = vunpack.c.h.b16 %v480
    %v550 = vunpack.c.l.b16 %v481
    %v551 = vunpack.c.h.b16 %v481
    %v552 = vunpack.c.l.b16 %v482
    %v553 = vunpack.c.h.b16 %v482
    %v554 = vunpack.c.l.b16 %v483
    %v555 = vunpack.c.h.b16 %v483
    %v556 = vunpack.c.l.b16 %v484
    %v557 = vunpack.c.h.b16 %v484
    %v558 = vunpack.c.l.b16 %v485
    %v559 = vunpack.c.h.b16 %v485
    %v560 = vunpack.c.l.b16 %v486
    %v561 = vunpack.c.h.b16 %v486
    %v562 = vunpack.c.l.b16 %v487
    %v563 = vunpack.c.h.b16 %v487
    %v564 = vunpack.c.l.b16 %v488
    %v565 = vunpack.c.h.b16 %v488
    %v566 = vunpack.c.l.b16 %v489
    %v567 = vunpack.c.h.b16 %v489
    %v568 = vunpack.c.l.b16 %v490
    %v569 = vunpack.c.h.b16 %v490
    %v570 = vunpack.c.l.b16 %v491
    %v571 = vunpack.c.h.b16 %v491
    %v572 = vunpack.c.l.b16 %v492
    %v573 = vunpack.c.h.b16 %v492
    %v574 = vunpack.c.l.b16 %v493
    %v575 = vunpack.c.h.b16 %v493
    %v576 = vunpack.c.l.b16 %v494
    %v577 = vunpack.c.h.b16 %v494
    %v578 = vunpack.c.l.b16 %v495
    %v579 = vunpack.c.h.b16 %v495
    %v580 = vunpack.c.l.b16 %v496
    %v581 = vunpack.c.h.b16 %v496
    %v582 = vunpack.c.l.b16 %v497
    %v583 = vunpack.c.h.b16 %v497
    %v584 = vunpack.c.l.b16 %v498
    %v585 = vunpack.c.h.b16 %v498
    %v586 = vunpack.c.l.b16 %v499
    %v587 = vunpack.c.h.b16 %v499
    %v588 = vunpack.c.l.b16 %v500
    %v589 = vunpack.c.h.b16 %v500
    %v590 = vunpack.c.l.b16 %v501
    %v591 = vunpack.c.h.b16 %v501
    %v592 = vunpack.c.l.b16 %v502
    %v593 = vunpack.c.h.b16 %v502
    %v594 = vunpack.c.l.b16 %v503
    %v595 = vunpack.c.h.b16 %v503
    %v596 = vunpack.c.l.b16 %v504
    %v597 = vunpack.c.h.b16 %v504
    %v598 = vunpack.c.l.b16 %v505
    %v599 = vunpack.c.h.b16 %v505
    %v600 = vunpack.c.l.b16 %v506
    %v601 = vunpack.c.h.b16 %v506
    %v602 = vunpack.c.l.b16 %v507
    %v603 = vunpack.c.h.b16 %v507
    %v604 = vpack.c.b16 %v542, %v540
    %v605 = vpack.c.b16 %v543, %v541
    %v606 = vpack.c.b16 %v546, %v544
    %v607 = vpack.c.b16 %v547, %v545
    %v608 = vpack.c.b16 %v550, %v548
    %v609 = vpack.c.b16 %v551, %v549
    %v610 = vpack.c.b16 %v554, %v552
    %v611 = vpack.c.b16 %v555, %v553
    %v612 = vpack.c.b16 %v558, %v556
    %v613 = vpack.c.b16 %v559, %v557
    %v614 = vpack.c.b16 %v562, %v560
    %v615 = vpack.c.b16 %v563, %v561
    %v616 = vpack.c.b16 %v566, %v564
    %v617 = vpack.c.b16 %v567, %v565
    %v618 = vpack.c.b16 %v570, %v568
    %v619 = vpack.c.b16 %v571, %v569
    %v620 = vpack.c.b16 %v574, %v572
    %v621 = vpack.c.b16 %v575, %v573
    %v622 = vpack.c.b16 %v578, %v576
    %v623 = vpack.c.b16 %v579, %v577
    %v624 = vpack.c.b16 %v582, %v580
    %v625 = vpack.c.b16 %v583, %v581
    %v626 = vpack.c.b16 %v586, %v584
    %v627 = vpack.c.b16 %v587, %v585
    %v628 = vpack.c.b16 %v590, %v588
    %v629 = vpack.c.b16 %v591, %v589
    %v630 = vpack.c.b16 %v594, %v592
    %v631 = vpack.c.b16 %v595, %v593
    %v632 = vpack.c.b16 %v598, %v596
    %v633 = vpack.c.b16 %v599, %v597
    %v634 = vpack.c.b16 %v602, %v600
    %v635 = vpack.c.b16 %v603, %v601
    %668 = vmatprep.subr.bf16.mxu0 %v605
    %669 = vmatpush1.bf16.msra.mxu0 %v604
    %670 = vmatprep.subr.bf16.mxu0 %v607
    %671 = vmatpush1.bf16.msra.mxu0 %v606
    %672 = vmatprep.subr.bf16.mxu0 %v609
    %673 = vmatpush1.bf16.msra.mxu0 %v608
    %674 = vmatprep.subr.bf16.mxu0 %v611
    %675 = vmatpush1.bf16.msra.mxu0 %v610
    %676 = vmatprep.subr.bf16.mxu0 %v613
    %677 = vmatpush1.bf16.msra.mxu0 %v612
    %678 = vmatprep.subr.bf16.mxu0 %v615
    %679 = vmatpush1.bf16.msra.mxu0 %v614
    %680 = vmatprep.subr.bf16.mxu0 %v617
    %681 = vmatpush1.bf16.msra.mxu0 %v616
    %682 = vmatprep.subr.bf16.mxu0 %v619
    %683 = vmatpush1.bf16.msra.mxu0 %v618
    %684 = vmatprep.subr.bf16.mxu0 %v621
    %685 = vmatpush1.bf16.msra.mxu0 %v620
    %686 = vmatprep.subr.bf16.mxu0 %v623
    %687 = vmatpush1.bf16.msra.mxu0 %v622
    %688 = vmatprep.subr.bf16.mxu0 %v625
    %689 = vmatpush1.bf16.msra.mxu0 %v624
    %690 = vmatprep.subr.bf16.mxu0 %v627
    %691 = vmatpush1.bf16.msra.mxu0 %v626
    %692 = vmatprep.subr.bf16.mxu0 %v629
    %693 = vmatpush1.bf16.msra.mxu0 %v628
    %694 = vmatprep.subr.bf16.mxu0 %v631
    %695 = vmatpush1.bf16.msra.mxu0 %v630
    %696 = vmatprep.subr.bf16.mxu0 %v633
    %697 = vmatpush1.bf16.msra.mxu0 %v632
    %698 = vmatprep.subr.bf16.mxu0 %v635
    %699 = vmatpush1.bf16.msra.mxu0 %v634
    %700 = vmatprep.mubr.bf16.mxu0 %v241
    %701 = vmatmul.mubr.bf16.gmra.mrb[0].mxu0 %v240
    %v702 = vpop.f32.mrb[0].mxu0
    %v703 = vadd.f32 0.0, %v702
    %v704 = vpop.f32.mrb[0].mxu0
    %v705 = vadd.f32 0.0, %v704
    %v706 = vpop.f32.mrb[0].mxu0
    %v707 = vpop.f32.mrb[0].mxu0
    %708 = vdwg.mxu0
    %s709 = scalar_lea.vmem [#allocation2], 512
    %v710 = vld [vmem:[%s709] sm:$0xff]
    %v711 = vld [vmem:[%s709 + $0x8] sm:$0xff]
    %v712 = vld [vmem:[%s709 + $0x10] sm:$0xff]
    %v713 = vld [vmem:[%s709 + $0x18] sm:$0xff]
    %v714 = vld [vmem:[%s709 + $0x20] sm:$0xff]
    %v715 = vld [vmem:[%s709 + $0x28] sm:$0xff]
    %v716 = vld [vmem:[%s709 + $0x30] sm:$0xff]
    %v717 = vld [vmem:[%s709 + $0x38] sm:$0xff]
    %v718 = vld [vmem:[%s709 + $0x40] sm:$0xff]
    %v719 = vld [vmem:[%s709 + $0x48] sm:$0xff]
    %v720 = vld [vmem:[%s709 + $0x50] sm:$0xff]
    %v721 = vld [vmem:[%s709 + $0x58] sm:$0xff]
    %v722 = vld [vmem:[%s709 + $0x60] sm:$0xff]
    %v723 = vld [vmem:[%s709 + $0x68] sm:$0xff]
    %v724 = vld [vmem:[%s709 + $0x70] sm:$0xff]
    %v725 = vld [vmem:[%s709 + $0x78] sm:$0xff]
    %v726 = vld [vmem:[%s709 + $0x80] sm:$0xff]
    %v727 = vld [vmem:[%s709 + $0x88] sm:$0xff]
    %v728 = vld [vmem:[%s709 + $0x90] sm:$0xff]
    %v729 = vld [vmem:[%s709 + $0x98] sm:$0xff]
    %v730 = vld [vmem:[%s709 + $0xa0] sm:$0xff]
    %v731 = vld [vmem:[%s709 + $0xa8] sm:$0xff]
    %v732 = vld [vmem:[%s709 + $0xb0] sm:$0xff]
    %v733 = vld [vmem:[%s709 + $0xb8] sm:$0xff]
    %v734 = vld [vmem:[%s709 + $0xc0] sm:$0xff]
    %v735 = vld [vmem:[%s709 + $0xc8] sm:$0xff]
    %v736 = vld [vmem:[%s709 + $0xd0] sm:$0xff]
    %v737 = vld [vmem:[%s709 + $0xd8] sm:$0xff]
    %v738 = vld [vmem:[%s709 + $0xe0] sm:$0xff]
    %v739 = vld [vmem:[%s709 + $0xe8] sm:$0xff]
    %v740 = vld [vmem:[%s709 + $0xf0] sm:$0xff]
    %v741 = vld [vmem:[%s709 + $0xf8] sm:$0xff]
    %v742 = vld [vmem:[#allocation5] sm:$0x3]
    %v743 = vld [vmem:[#allocation5 + $0x2] sm:$0x3]
    %v744 = vadd.f32 %v185, %v469
    %v745 = vadd.f32 %v186, %v471
    %v747 = vlaneseq
    %v748 = vshrl.u32 %v747, 7
    %v749 = vsub.s32 0, %v748
    %v750 = vrot.slane %v742, %v749
    %v751 = vlaneseq
    %v752 = vshrl.u32 %v751, 7
    %v753 = vsub.s32 1, %v752
    %v754 = vrot.slane %v742, %v753
    %v757 = vadd.f32 %v744, %v750
    %v758 = vadd.f32 %v745, %v754
    %v759 = vxor.u32 %v757, 2147483648
    %v760 = vxor.u32 %v758, 2147483648
    %v761 = vmul.f32 %v759, 1.442695
    %v762 = vpow.pop %v761
    %v763 = vmul.f32 %v760, 1.442695
    %v764 = vpow.pop %v763
    %v765 = vadd.f32 %v762, 1.0
    %v766 = vadd.f32 %v764, 1.0
    %v767 = vrcp.pop %v765
    %v768 = vmul.f32 1.0, %v767
    %v769 = vrcp.pop %v766
    %v770 = vmul.f32 1.0, %v769
    %v771 = vadd.f32 %v206, %v703
    %v772 = vadd.f32 %v207, %v705
    %v774 = vlaneseq
    %v775 = vshrl.u32 %v774, 7
    %v776 = vsub.s32 0, %v775
    %v777 = vrot.slane %v743, %v776
    %v778 = vlaneseq
    %v779 = vshrl.u32 %v778, 7
    %v780 = vsub.s32 1, %v779
    %v781 = vrot.slane %v743, %v780
    %v784 = vadd.f32 %v771, %v777
    %v785 = vadd.f32 %v772, %v781
    %v786 = vxor.u32 %v784, 2147483648
    %v787 = vxor.u32 %v785, 2147483648
    %v788 = vmul.f32 %v786, 1.442695
    %v789 = vpow.pop %v788
    %v790 = vmul.f32 %v787, 1.442695
    %v791 = vpow.pop %v790
    %v792 = vadd.f32 %v789, 1.0
    %v793 = vadd.f32 %v791, 1.0
    %v794 = vrcp.pop %v792
    %v795 = vmul.f32 1.0, %v794
    %v796 = vrcp.pop %v793
    %v797 = vmul.f32 1.0, %v796
    %v798 = vld [vmem:[#allocation7] sm:$0x3]
    %v800 = vlaneseq
    %v801 = vshrl.u32 %v800, 7
    %v802 = vsub.s32 0, %v801
    %v803 = vrot.slane %v798, %v802
    %v804 = vlaneseq
    %v805 = vshrl.u32 %v804, 7
    %v806 = vsub.s32 1, %v805
    %v807 = vrot.slane %v798, %v806
    %v810 = vadd.f32 %v227, %v803
    %v811 = vadd.f32 %v228, %v807
    %v812 = vld [vmem:[#allocation8] sm:$0x3]
    %v814 = vlaneseq
    %v815 = vshrl.u32 %v814, 7
    %v816 = vsub.s32 0, %v815
    %v817 = vrot.slane %v812, %v816
    %v818 = vlaneseq
    %v819 = vshrl.u32 %v818, 7
    %v820 = vsub.s32 1, %v819
    %v821 = vrot.slane %v812, %v820
    %v856 = vunpack.c.l.b16 %v710
    %v857 = vunpack.c.h.b16 %v710
    %v858 = vunpack.c.l.b16 %v711
    %v859 = vunpack.c.h.b16 %v711
    %v860 = vunpack.c.l.b16 %v712
    %v861 = vunpack.c.h.b16 %v712
    %v862 = vunpack.c.l.b16 %v713
    %v863 = vunpack.c.h.b16 %v713
    %v864 = vunpack.c.l.b16 %v714
    %v865 = vunpack.c.h.b16 %v714
    %v866 = vunpack.c.l.b16 %v715
    %v867 = vunpack.c.h.b16 %v715
    %v868 = vunpack.c.l.b16 %v716
    %v869 = vunpack.c.h.b16 %v716
    %v870 = vunpack.c.l.b16 %v717
    %v871 = vunpack.c.h.b16 %v717
    %v872 = vunpack.c.l.b16 %v718
    %v873 = vunpack.c.h.b16 %v718
    %v874 = vunpack.c.l.b16 %v719
    %v875 = vunpack.c.h.b16 %v719
    %v876 = vunpack.c.l.b16 %v720
    %v877 = vunpack.c.h.b16 %v720
    %v878 = vunpack.c.l.b16 %v721
    %v879 = vunpack.c.h.b16 %v721
    %v880 = vunpack.c.l.b16 %v722
    %v881 = vunpack.c.h.b16 %v722
    %v882 = vunpack.c.l.b16 %v723
    %v883 = vunpack.c.h.b16 %v723
    %v884 = vunpack.c.l.b16 %v724
    %v885 = vunpack.c.h.b16 %v724
    %v886 = vunpack.c.l.b16 %v725
    %v887 = vunpack.c.h.b16 %v725
    %v888 = vunpack.c.l.b16 %v726
    %v889 = vunpack.c.h.b16 %v726
    %v890 = vunpack.c.l.b16 %v727
    %v891 = vunpack.c.h.b16 %v727
    %v892 = vunpack.c.l.b16 %v728
    %v893 = vunpack.c.h.b16 %v728
    %v894 = vunpack.c.l.b16 %v729
    %v895 = vunpack.c.h.b16 %v729
    %v896 = vunpack.c.l.b16 %v730
    %v897 = vunpack.c.h.b16 %v730
    %v898 = vunpack.c.l.b16 %v731
    %v899 = vunpack.c.h.b16 %v731
    %v900 = vunpack.c.l.b16 %v732
    %v901 = vunpack.c.h.b16 %v732
    %v902 = vunpack.c.l.b16 %v733
    %v903 = vunpack.c.h.b16 %v733
    %v904 = vunpack.c.l.b16 %v734
    %v905 = vunpack.c.h.b16 %v734
    %v906 = vunpack.c.l.b16 %v735
    %v907 = vunpack.c.h.b16 %v735
    %v908 = vunpack.c.l.b16 %v736
    %v909 = vunpack.c.h.b16 %v736
    %v910 = vunpack.c.l.b16 %v737
    %v911 = vunpack.c.h.b16 %v737
    %v912 = vunpack.c.l.b16 %v738
    %v913 = vunpack.c.h.b16 %v738
    %v914 = vunpack.c.l.b16 %v739
    %v915 = vunpack.c.h.b16 %v739
    %v916 = vunpack.c.l.b16 %v740
    %v917 = vunpack.c.h.b16 %v740
    %v918 = vunpack.c.l.b16 %v741
    %v919 = vunpack.c.h.b16 %v741
    %v920 = vpack.c.b16 %v858, %v856
    %v921 = vpack.c.b16 %v859, %v857
    %v922 = vpack.c.b16 %v862, %v860
    %v923 = vpack.c.b16 %v863, %v861
    %v924 = vpack.c.b16 %v866, %v864
    %v925 = vpack.c.b16 %v867, %v865
    %v926 = vpack.c.b16 %v870, %v868
    %v927 = vpack.c.b16 %v871, %v869
    %v928 = vpack.c.b16 %v874, %v872
    %v929 = vpack.c.b16 %v875, %v873
    %v930 = vpack.c.b16 %v878, %v876
    %v931 = vpack.c.b16 %v879, %v877
    %v932 = vpack.c.b16 %v882, %v880
    %v933 = vpack.c.b16 %v883, %v881
    %v934 = vpack.c.b16 %v886, %v884
    %v935 = vpack.c.b16 %v887, %v885
    %v936 = vpack.c.b16 %v890, %v888
    %v937 = vpack.c.b16 %v891, %v889
    %v938 = vpack.c.b16 %v894, %v892
    %v939 = vpack.c.b16 %v895, %v893
    %v940 = vpack.c.b16 %v898, %v896
    %v941 = vpack.c.b16 %v899, %v897
    %v942 = vpack.c.b16 %v902, %v900
    %v943 = vpack.c.b16 %v903, %v901
    %v944 = vpack.c.b16 %v906, %v904
    %v945 = vpack.c.b16 %v907, %v905
    %v946 = vpack.c.b16 %v910, %v908
    %v947 = vpack.c.b16 %v911, %v909
    %v948 = vpack.c.b16 %v914, %v912
    %v949 = vpack.c.b16 %v915, %v913
    %v950 = vpack.c.b16 %v918, %v916
    %v951 = vpack.c.b16 %v919, %v917
    %984 = vmatprep.subr.bf16.mxu0 %v921
    %985 = vmatpush1.bf16.msra.mxu0 %v920
    %986 = vmatprep.subr.bf16.mxu0 %v923
    %987 = vmatpush1.bf16.msra.mxu0 %v922
    %988 = vmatprep.subr.bf16.mxu0 %v925
    %989 = vmatpush1.bf16.msra.mxu0 %v924
    %990 = vmatprep.subr.bf16.mxu0 %v927
    %991 = vmatpush1.bf16.msra.mxu0 %v926
    %992 = vmatprep.subr.bf16.mxu0 %v929
    %993 = vmatpush1.bf16.msra.mxu0 %v928
    %994 = vmatprep.subr.bf16.mxu0 %v931
    %995 = vmatpush1.bf16.msra.mxu0 %v930
    %996 = vmatprep.subr.bf16.mxu0 %v933
    %997 = vmatpush1.bf16.msra.mxu0 %v932
    %998 = vmatprep.subr.bf16.mxu0 %v935
    %999 = vmatpush1.bf16.msra.mxu0 %v934
    %1000 = vmatprep.subr.bf16.mxu0 %v937
    %1001 = vmatpush1.bf16.msra.mxu0 %v936
    %1002 = vmatprep.subr.bf16.mxu0 %v939
    %1003 = vmatpush1.bf16.msra.mxu0 %v938
    %1004 = vmatprep.subr.bf16.mxu0 %v941
    %1005 = vmatpush1.bf16.msra.mxu0 %v940
    %1006 = vmatprep.subr.bf16.mxu0 %v943
    %1007 = vmatpush1.bf16.msra.mxu0 %v942
    %1008 = vmatprep.subr.bf16.mxu0 %v945
    %1009 = vmatpush1.bf16.msra.mxu0 %v944
    %1010 = vmatprep.subr.bf16.mxu0 %v947
    %1011 = vmatpush1.bf16.msra.mxu0 %v946
    %1012 = vmatprep.subr.bf16.mxu0 %v949
    %1013 = vmatpush1.bf16.msra.mxu0 %v948
    %1014 = vmatprep.subr.bf16.mxu0 %v951
    %1015 = vmatpush1.bf16.msra.mxu0 %v950
    %1016 = vmatprep.mubr.bf16.mxu0 %v241
    %1017 = vmatmul.mubr.bf16.gmra.mrb[0].mxu0 %v240
    %v1018 = vpop.f32.mrb[0].mxu0
    %v1019 = vadd.f32 %v817, %v1018
    %v1020 = vpop.f32.mrb[0].mxu0
    %v1021 = vadd.f32 %v821, %v1020
    %v1022 = vpop.f32.mrb[0].mxu0
    %v1023 = vpop.f32.mrb[0].mxu0
    %1024 = vdwg.mxu0
    %v1025 = vmul.f32 %v768, %v1019
    %v1026 = vmul.f32 %v770, %v1021
    %v1027 = vadd.f32 %v810, %v1025
    %v1028 = vadd.f32 %v811, %v1026
    %v1029 = vtanh.pop %v1027
    %v1030 = vtanh.pop %v1028
    %v1033 = vcombine.low %v1029, %v1030
    %v1035 = vunpack.c.l.s4 1983009808
    %v1036 = vunpack.c.0.s8 %v1035
    %v1037 = vlaneseq
    %v1038 = vshrl.u32 %v1037, 7
    %v1039 = vsub.s32 %v1036, %v1038
    %v1040 = vrot.slane %v1033, %v1039
    %v1042 = vsub.f32 %v154, %v1040
    %v1045 = vunpack.c.l.s4 1983009808
    %v1046 = vunpack.c.0.s8 %v1045
    %v1047 = vlaneseq
    %v1048 = vshrl.u32 %v1047, 7
    %v1049 = vsub.s32 %v1046, %v1048
    %v1050 = vrot.slane %v1042, %v1049
    %v1051 = vcombine.high %v1050, %v1050
    %v1054 = vmul.f32 %v795, %v1050
    %v1055 = vmul.f32 %v797, %v1051
    %v1056 = vadd.f32 %v1029, %v1054
    %v1057 = vadd.f32 %v1030, %v1055
    %v1060 = vcombine.low %v1056, %v1057
    %v1062 = vunpack.c.l.s4 1983009808
    %v1063 = vunpack.c.0.s8 %v1062
    %v1064 = vlaneseq
    %v1065 = vshrl.u32 %v1064, 7
    %v1066 = vsub.s32 %v1063, %v1065
    %v1067 = vrot.slane %v1060, %v1066
    %1069 = vst [vmem:[#allocation13] sm:$0xf] %v1067
    %v1070 = vld [vmem:[%s2] sm:$0x3]
    %v1071 = vpack.c.bf16 %v1056, %v1056
    %v1072 = vpack.c.bf16 %v1057, %v1057
    %v1073 = vld [vmem:[#allocation10] sm:$0xf]
    %v1074 = vld [vmem:[#allocation10 + $0x4] sm:$0xf]
    %v1075 = vld [vmem:[#allocation10 + $0x8] sm:$0xf]
    %v1076 = vld [vmem:[#allocation10 + $0xc] sm:$0xf]
    %v1077 = vld [vmem:[#allocation10 + $0x10] sm:$0xf]
    %v1078 = vld [vmem:[#allocation10 + $0x14] sm:$0xf]
    %v1079 = vld [vmem:[#allocation10 + $0x18] sm:$0xf]
    %v1080 = vld [vmem:[#allocation10 + $0x1c] sm:$0xf]
    %v1081 = vld [vmem:[#allocation10 + $0x20] sm:$0xf]
    %v1082 = vld [vmem:[#allocation10 + $0x24] sm:$0xf]
    %v1083 = vld [vmem:[#allocation10 + $0x28] sm:$0xf]
    %v1084 = vld [vmem:[#allocation10 + $0x2c] sm:$0xf]
    %v1085 = vld [vmem:[#allocation10 + $0x30] sm:$0xf]
    %v1086 = vld [vmem:[#allocation10 + $0x34] sm:$0xf]
    %v1087 = vld [vmem:[#allocation10 + $0x38] sm:$0xf]
    %v1088 = vld [vmem:[#allocation10 + $0x3c] sm:$0xf]
    %v1089 = vld [vmem:[#allocation10 + $0x40] sm:$0xf]
    %v1090 = vld [vmem:[#allocation10 + $0x44] sm:$0xf]
    %v1091 = vld [vmem:[#allocation10 + $0x48] sm:$0xf]
    %v1092 = vld [vmem:[#allocation10 + $0x4c] sm:$0xf]
    %v1093 = vld [vmem:[#allocation10 + $0x50] sm:$0xf]
    %v1094 = vld [vmem:[#allocation10 + $0x54] sm:$0xf]
    %v1095 = vld [vmem:[#allocation10 + $0x58] sm:$0xf]
    %v1096 = vld [vmem:[#allocation10 + $0x5c] sm:$0xf]
    %v1097 = vld [vmem:[#allocation10 + $0x60] sm:$0xf]
    %v1098 = vld [vmem:[#allocation10 + $0x64] sm:$0xf]
    %v1099 = vld [vmem:[#allocation10 + $0x68] sm:$0xf]
    %v1100 = vld [vmem:[#allocation10 + $0x6c] sm:$0xf]
    %v1101 = vld [vmem:[#allocation10 + $0x70] sm:$0xf]
    %v1102 = vld [vmem:[#allocation10 + $0x74] sm:$0xf]
    %v1103 = vld [vmem:[#allocation10 + $0x78] sm:$0xf]
    %v1104 = vld [vmem:[#allocation10 + $0x7c] sm:$0xf]
    %s1105 = scalar_lea.vmem [#allocation10], 128
    %v1106 = vld [vmem:[%s1105] sm:$0xf]
    %v1107 = vld [vmem:[%s1105 + $0x4] sm:$0xf]
    %v1108 = vld [vmem:[%s1105 + $0x8] sm:$0xf]
    %v1109 = vld [vmem:[%s1105 + $0xc] sm:$0xf]
    %v1110 = vld [vmem:[%s1105 + $0x10] sm:$0xf]
    %v1111 = vld [vmem:[%s1105 + $0x14] sm:$0xf]
    %v1112 = vld [vmem:[%s1105 + $0x18] sm:$0xf]
    %v1113 = vld [vmem:[%s1105 + $0x1c] sm:$0xf]
    %v1114 = vld [vmem:[%s1105 + $0x20] sm:$0xf]
    %v1115 = vld [vmem:[%s1105 + $0x24] sm:$0xf]
    %v1116 = vld [vmem:[%s1105 + $0x28] sm:$0xf]
    %v1117 = vld [vmem:[%s1105 + $0x2c] sm:$0xf]
    %v1118 = vld [vmem:[%s1105 + $0x30] sm:$0xf]
    %v1119 = vld [vmem:[%s1105 + $0x34] sm:$0xf]
    %v1120 = vld [vmem:[%s1105 + $0x38] sm:$0xf]
    %v1121 = vld [vmem:[%s1105 + $0x3c] sm:$0xf]
    %v1122 = vld [vmem:[%s1105 + $0x40] sm:$0xf]
    %v1123 = vld [vmem:[%s1105 + $0x44] sm:$0xf]
    %v1124 = vld [vmem:[%s1105 + $0x48] sm:$0xf]
    %v1125 = vld [vmem:[%s1105 + $0x4c] sm:$0xf]
    %v1126 = vld [vmem:[%s1105 + $0x50] sm:$0xf]
    %v1127 = vld [vmem:[%s1105 + $0x54] sm:$0xf]
    %v1128 = vld [vmem:[%s1105 + $0x58] sm:$0xf]
    %v1129 = vld [vmem:[%s1105 + $0x5c] sm:$0xf]
    %v1130 = vld [vmem:[%s1105 + $0x60] sm:$0xf]
    %v1131 = vld [vmem:[%s1105 + $0x64] sm:$0xf]
    %v1132 = vld [vmem:[%s1105 + $0x68] sm:$0xf]
    %v1133 = vld [vmem:[%s1105 + $0x6c] sm:$0xf]
    %v1134 = vld [vmem:[%s1105 + $0x70] sm:$0xf]
    %v1135 = vld [vmem:[%s1105 + $0x74] sm:$0xf]
    %v1136 = vld [vmem:[%s1105 + $0x78] sm:$0xf]
    %v1137 = vld [vmem:[%s1105 + $0x7c] sm:$0xf]
    %s1138 = scalar_lea.vmem [#allocation10], 256
    %v1139 = vld [vmem:[%s1138] sm:$0xf]
    %v1140 = vld [vmem:[%s1138 + $0x4] sm:$0xf]
    %v1141 = vld [vmem:[%s1138 + $0x8] sm:$0xf]
    %v1142 = vld [vmem:[%s1138 + $0xc] sm:$0xf]
    %v1143 = vld [vmem:[%s1138 + $0x10] sm:$0xf]
    %v1144 = vld [vmem:[%s1138 + $0x14] sm:$0xf]
    %v1145 = vld [vmem:[%s1138 + $0x18] sm:$0xf]
    %v1146 = vld [vmem:[%s1138 + $0x1c] sm:$0xf]
    %v1147 = vld [vmem:[%s1138 + $0x20] sm:$0xf]
    %v1148 = vld [vmem:[%s1138 + $0x24] sm:$0xf]
    %v1149 = vld [vmem:[%s1138 + $0x28] sm:$0xf]
    %v1150 = vld [vmem:[%s1138 + $0x2c] sm:$0xf]
    %v1151 = vld [vmem:[%s1138 + $0x30] sm:$0xf]
    %v1152 = vld [vmem:[%s1138 + $0x34] sm:$0xf]
    %v1153 = vld [vmem:[%s1138 + $0x38] sm:$0xf]
    %v1154 = vld [vmem:[%s1138 + $0x3c] sm:$0xf]
    %v1155 = vld [vmem:[%s1138 + $0x40] sm:$0xf]
    %v1156 = vld [vmem:[%s1138 + $0x44] sm:$0xf]
    %v1157 = vld [vmem:[%s1138 + $0x48] sm:$0xf]
    %v1158 = vld [vmem:[%s1138 + $0x4c] sm:$0xf]
    %v1159 = vld [vmem:[%s1138 + $0x50] sm:$0xf]
    %v1160 = vld [vmem:[%s1138 + $0x54] sm:$0xf]
    %v1161 = vld [vmem:[%s1138 + $0x58] sm:$0xf]
    %v1162 = vld [vmem:[%s1138 + $0x5c] sm:$0xf]
    %v1163 = vld [vmem:[%s1138 + $0x60] sm:$0xf]
    %v1164 = vld [vmem:[%s1138 + $0x64] sm:$0xf]
    %v1165 = vld [vmem:[%s1138 + $0x68] sm:$0xf]
    %v1166 = vld [vmem:[%s1138 + $0x6c] sm:$0xf]
    %v1167 = vld [vmem:[%s1138 + $0x70] sm:$0xf]
    %v1168 = vld [vmem:[%s1138 + $0x74] sm:$0xf]
    %v1169 = vld [vmem:[%s1138 + $0x78] sm:$0xf]
    %v1170 = vld [vmem:[%s1138 + $0x7c] sm:$0xf]
    %v1171 = vpack.c.bf16 %v1070, %v1070
    %v1172 = vld [vmem:[%s10] sm:$0xf]
    %v1173 = vld [vmem:[%s10 + $0x4] sm:$0xf]
    %v1174 = vld [vmem:[%s10 + $0x8] sm:$0xf]
    %v1175 = vld [vmem:[%s10 + $0xc] sm:$0xf]
    %v1176 = vld [vmem:[%s10 + $0x10] sm:$0xf]
    %v1177 = vld [vmem:[%s10 + $0x14] sm:$0xf]
    %v1178 = vld [vmem:[%s10 + $0x18] sm:$0xf]
    %v1179 = vld [vmem:[%s10 + $0x1c] sm:$0xf]
    %v1180 = vld [vmem:[%s10 + $0x20] sm:$0xf]
    %v1181 = vld [vmem:[%s10 + $0x24] sm:$0xf]
    %v1182 = vld [vmem:[%s10 + $0x28] sm:$0xf]
    %v1183 = vld [vmem:[%s10 + $0x2c] sm:$0xf]
    %v1184 = vld [vmem:[%s10 + $0x30] sm:$0xf]
    %v1185 = vld [vmem:[%s10 + $0x34] sm:$0xf]
    %v1186 = vld [vmem:[%s10 + $0x38] sm:$0xf]
    %v1187 = vld [vmem:[%s10 + $0x3c] sm:$0xf]
    %v1204 = vunpack.c.l.b16 %v1172
    %v1205 = vunpack.c.l.b16 %v1173
    %v1206 = vunpack.c.l.b16 %v1174
    %v1207 = vunpack.c.l.b16 %v1175
    %v1208 = vunpack.c.l.b16 %v1176
    %v1209 = vunpack.c.l.b16 %v1177
    %v1210 = vunpack.c.l.b16 %v1178
    %v1211 = vunpack.c.l.b16 %v1179
    %v1212 = vunpack.c.l.b16 %v1180
    %v1213 = vunpack.c.l.b16 %v1181
    %v1214 = vunpack.c.l.b16 %v1182
    %v1215 = vunpack.c.l.b16 %v1183
    %v1216 = vunpack.c.l.b16 %v1184
    %v1217 = vunpack.c.l.b16 %v1185
    %v1218 = vunpack.c.l.b16 %v1186
    %v1219 = vunpack.c.l.b16 %v1187
    %v1220 = vpack.c.b16 %v1205, %v1204
    %v1221 = vpack.c.b16 %v1207, %v1206
    %v1222 = vpack.c.b16 %v1209, %v1208
    %v1223 = vpack.c.b16 %v1211, %v1210
    %v1224 = vpack.c.b16 %v1213, %v1212
    %v1225 = vpack.c.b16 %v1215, %v1214
    %v1226 = vpack.c.b16 %v1217, %v1216
    %v1227 = vpack.c.b16 %v1219, %v1218
    %1236 = vmatprep.subr.bf16.mxu0 0
    %1237 = vmatpush1.bf16.msra.mxu0 %v1220
    %1238 = vmatprep.subr.bf16.mxu0 0
    %1239 = vmatpush1.bf16.msra.mxu0 %v1221
    %1240 = vmatprep.subr.bf16.mxu0 0
    %1241 = vmatpush1.bf16.msra.mxu0 %v1222
    %1242 = vmatprep.subr.bf16.mxu0 0
    %1243 = vmatpush1.bf16.msra.mxu0 %v1223
    %1244 = vmatprep.subr.bf16.mxu0 0
    %1245 = vmatpush1.bf16.msra.mxu0 %v1224
    %1246 = vmatprep.subr.bf16.mxu0 0
    %1247 = vmatpush1.bf16.msra.mxu0 %v1225
    %1248 = vmatprep.subr.bf16.mxu0 0
    %1249 = vmatpush1.bf16.msra.mxu0 %v1226
    %1250 = vmatprep.subr.bf16.mxu0 0
    %1251 = vmatpush1.bf16.msra.mxu0 %v1227
    %1252 = vmatprep.subr.bf16.mxu0 0
    %1253 = vmatpush1.bf16.msra.mxu0 0
    %1254 = vmatprep.subr.bf16.mxu0 0
    %1255 = vmatpush1.bf16.msra.mxu0 0
    %1256 = vmatprep.subr.bf16.mxu0 0
    %1257 = vmatpush1.bf16.msra.mxu0 0
    %1258 = vmatprep.subr.bf16.mxu0 0
    %1259 = vmatpush1.bf16.msra.mxu0 0
    %1260 = vmatprep.subr.bf16.mxu0 0
    %1261 = vmatpush1.bf16.msra.mxu0 0
    %1262 = vmatprep.subr.bf16.mxu0 0
    %1263 = vmatpush1.bf16.msra.mxu0 0
    %1264 = vmatprep.subr.bf16.mxu0 0
    %1265 = vmatpush1.bf16.msra.mxu0 0
    %1266 = vmatprep.subr.bf16.mxu0 0
    %1267 = vmatpush1.bf16.msra.mxu0 0
    %1268 = vmatprep.mubr.bf16.mxu0 0
    %1269 = vmatmul.mubr.bf16.gmra.mrb[0].mxu0 %v1171
    %v1270 = vpop.f32.mrb[0].mxu0
    %v1271 = vadd.f32 0.0, %v1270
    %v1272 = vpop.f32.mrb[0].mxu0
    %v1273 = vpop.f32.mrb[0].mxu0
    %v1274 = vpop.f32.mrb[0].mxu0
    %1275 = vdwg.mxu0
    %s1276 = scalar_lea.vmem %s10, 64
    %v1277 = vld [vmem:[%s1276] sm:$0xf]
    %v1278 = vld [vmem:[%s1276 + $0x4] sm:$0xf]
    %v1279 = vld [vmem:[%s1276 + $0x8] sm:$0xf]
    %v1280 = vld [vmem:[%s1276 + $0xc] sm:$0xf]
    %v1281 = vld [vmem:[%s1276 + $0x10] sm:$0xf]
    %v1282 = vld [vmem:[%s1276 + $0x14] sm:$0xf]
    %v1283 = vld [vmem:[%s1276 + $0x18] sm:$0xf]
    %v1284 = vld [vmem:[%s1276 + $0x1c] sm:$0xf]
    %v1285 = vld [vmem:[%s1276 + $0x20] sm:$0xf]
    %v1286 = vld [vmem:[%s1276 + $0x24] sm:$0xf]
    %v1287 = vld [vmem:[%s1276 + $0x28] sm:$0xf]
    %v1288 = vld [vmem:[%s1276 + $0x2c] sm:$0xf]
    %v1289 = vld [vmem:[%s1276 + $0x30] sm:$0xf]
    %v1290 = vld [vmem:[%s1276 + $0x34] sm:$0xf]
    %v1291 = vld [vmem:[%s1276 + $0x38] sm:$0xf]
    %v1292 = vld [vmem:[%s1276 + $0x3c] sm:$0xf]
    %v1309 = vunpack.c.l.b16 %v1277
    %v1310 = vunpack.c.l.b16 %v1278
    %v1311 = vunpack.c.l.b16 %v1279
    %v1312 = vunpack.c.l.b16 %v1280
    %v1313 = vunpack.c.l.b16 %v1281
    %v1314 = vunpack.c.l.b16 %v1282
    %v1315 = vunpack.c.l.b16 %v1283
    %v1316 = vunpack.c.l.b16 %v1284
    %v1317 = vunpack.c.l.b16 %v1285
    %v1318 = vunpack.c.l.b16 %v1286
    %v1319 = vunpack.c.l.b16 %v1287
    %v1320 = vunpack.c.l.b16 %v1288
    %v1321 = vunpack.c.l.b16 %v1289
    %v1322 = vunpack.c.l.b16 %v1290
    %v1323 = vunpack.c.l.b16 %v1291
    %v1324 = vunpack.c.l.b16 %v1292
    %v1325 = vpack.c.b16 %v1310, %v1309
    %v1326 = vpack.c.b16 %v1312, %v1311
    %v1327 = vpack.c.b16 %v1314, %v1313
    %v1328 = vpack.c.b16 %v1316, %v1315
    %v1329 = vpack.c.b16 %v1318, %v1317
    %v1330 = vpack.c.b16 %v1320, %v1319
    %v1331 = vpack.c.b16 %v1322, %v1321
    %v1332 = vpack.c.b16 %v1324, %v1323
    %1341 = vmatprep.subr.bf16.mxu0 0
    %1342 = vmatpush1.bf16.msra.mxu0 %v1325
    %1343 = vmatprep.subr.bf16.mxu0 0
    %1344 = vmatpush1.bf16.msra.mxu0 %v1326
    %1345 = vmatprep.subr.bf16.mxu0 0
    %1346 = vmatpush1.bf16.msra.mxu0 %v1327
    %1347 = vmatprep.subr.bf16.mxu0 0
    %1348 = vmatpush1.bf16.msra.mxu0 %v1328
    %1349 = vmatprep.subr.bf16.mxu0 0
    %1350 = vmatpush1.bf16.msra.mxu0 %v1329
    %1351 = vmatprep.subr.bf16.mxu0 0
    %1352 = vmatpush1.bf16.msra.mxu0 %v1330
    %1353 = vmatprep.subr.bf16.mxu0 0
    %1354 = vmatpush1.bf16.msra.mxu0 %v1331
    %1355 = vmatprep.subr.bf16.mxu0 0
    %1356 = vmatpush1.bf16.msra.mxu0 %v1332
    %1357 = vmatprep.subr.bf16.mxu0 0
    %1358 = vmatpush1.bf16.msra.mxu0 0
    %1359 = vmatprep.subr.bf16.mxu0 0
    %1360 = vmatpush1.bf16.msra.mxu0 0
    %1361 = vmatprep.subr.bf16.mxu0 0
    %1362 = vmatpush1.bf16.msra.mxu0 0
    %1363 = vmatprep.subr.bf16.mxu0 0
    %1364 = vmatpush1.bf16.msra.mxu0 0
    %1365 = vmatprep.subr.bf16.mxu0 0
    %1366 = vmatpush1.bf16.msra.mxu0 0
    %1367 = vmatprep.subr.bf16.mxu0 0
    %1368 = vmatpush1.bf16.msra.mxu0 0
    %1369 = vmatprep.subr.bf16.mxu0 0
    %1370 = vmatpush1.bf16.msra.mxu0 0
    %1371 = vmatprep.subr.bf16.mxu0 0
    %1372 = vmatpush1.bf16.msra.mxu0 0
    %1373 = vmatprep.mubr.bf16.mxu0 0
    %1374 = vmatmul.mubr.bf16.gmra.mrb[0].mxu0 %v1171
    %v1375 = vpop.f32.mrb[0].mxu0
    %v1376 = vadd.f32 0.0, %v1375
    %v1377 = vpop.f32.mrb[0].mxu0
    %v1378 = vpop.f32.mrb[0].mxu0
    %v1379 = vpop.f32.mrb[0].mxu0
    %1380 = vdwg.mxu0
    %s1381 = scalar_lea.vmem %s10, 128
    %v1382 = vld [vmem:[%s1381] sm:$0xf]
    %v1383 = vld [vmem:[%s1381 + $0x4] sm:$0xf]
    %v1384 = vld [vmem:[%s1381 + $0x8] sm:$0xf]
    %v1385 = vld [vmem:[%s1381 + $0xc] sm:$0xf]
    %v1386 = vld [vmem:[%s1381 + $0x10] sm:$0xf]
    %v1387 = vld [vmem:[%s1381 + $0x14] sm:$0xf]
    %v1388 = vld [vmem:[%s1381 + $0x18] sm:$0xf]
    %v1389 = vld [vmem:[%s1381 + $0x1c] sm:$0xf]
    %v1390 = vld [vmem:[%s1381 + $0x20] sm:$0xf]
    %v1391 = vld [vmem:[%s1381 + $0x24] sm:$0xf]
    %v1392 = vld [vmem:[%s1381 + $0x28] sm:$0xf]
    %v1393 = vld [vmem:[%s1381 + $0x2c] sm:$0xf]
    %v1394 = vld [vmem:[%s1381 + $0x30] sm:$0xf]
    %v1395 = vld [vmem:[%s1381 + $0x34] sm:$0xf]
    %v1396 = vld [vmem:[%s1381 + $0x38] sm:$0xf]
    %v1397 = vld [vmem:[%s1381 + $0x3c] sm:$0xf]
    %v1398 = vld [vmem:[#allocation11] sm:$0x1]
    %v1399 = vld [vmem:[#allocation11 + $0x1] sm:$0x1]
    %v1432 = vunpack.c.l.b16 %v1073
    %v1433 = vunpack.c.l.b16 %v1074
    %v1434 = vunpack.c.l.b16 %v1075
    %v1435 = vunpack.c.l.b16 %v1076
    %v1436 = vunpack.c.l.b16 %v1077
    %v1437 = vunpack.c.l.b16 %v1078
    %v1438 = vunpack.c.l.b16 %v1079
    %v1439 = vunpack.c.l.b16 %v1080
    %v1440 = vunpack.c.l.b16 %v1081
    %v1441 = vunpack.c.l.b16 %v1082
    %v1442 = vunpack.c.l.b16 %v1083
    %v1443 = vunpack.c.l.b16 %v1084
    %v1444 = vunpack.c.l.b16 %v1085
    %v1445 = vunpack.c.l.b16 %v1086
    %v1446 = vunpack.c.l.b16 %v1087
    %v1447 = vunpack.c.l.b16 %v1088
    %v1448 = vunpack.c.l.b16 %v1089
    %v1449 = vunpack.c.l.b16 %v1090
    %v1450 = vunpack.c.l.b16 %v1091
    %v1451 = vunpack.c.l.b16 %v1092
    %v1452 = vunpack.c.l.b16 %v1093
    %v1453 = vunpack.c.l.b16 %v1094
    %v1454 = vunpack.c.l.b16 %v1095
    %v1455 = vunpack.c.l.b16 %v1096
    %v1456 = vunpack.c.l.b16 %v1097
    %v1457 = vunpack.c.l.b16 %v1098
    %v1458 = vunpack.c.l.b16 %v1099
    %v1459 = vunpack.c.l.b16 %v1100
    %v1460 = vunpack.c.l.b16 %v1101
    %v1461 = vunpack.c.l.b16 %v1102
    %v1462 = vunpack.c.l.b16 %v1103
    %v1463 = vunpack.c.l.b16 %v1104
    %v1464 = vpack.c.b16 %v1433, %v1432
    %v1465 = vpack.c.b16 %v1435, %v1434
    %v1466 = vpack.c.b16 %v1437, %v1436
    %v1467 = vpack.c.b16 %v1439, %v1438
    %v1468 = vpack.c.b16 %v1441, %v1440
    %v1469 = vpack.c.b16 %v1443, %v1442
    %v1470 = vpack.c.b16 %v1445, %v1444
    %v1471 = vpack.c.b16 %v1447, %v1446
    %v1472 = vpack.c.b16 %v1449, %v1448
    %v1473 = vpack.c.b16 %v1451, %v1450
    %v1474 = vpack.c.b16 %v1453, %v1452
    %v1475 = vpack.c.b16 %v1455, %v1454
    %v1476 = vpack.c.b16 %v1457, %v1456
    %v1477 = vpack.c.b16 %v1459, %v1458
    %v1478 = vpack.c.b16 %v1461, %v1460
    %v1479 = vpack.c.b16 %v1463, %v1462
    %1496 = vmatprep.subr.bf16.mxu0 0
    %1497 = vmatpush1.bf16.msra.mxu0 %v1464
    %1498 = vmatprep.subr.bf16.mxu0 0
    %1499 = vmatpush1.bf16.msra.mxu0 %v1465
    %1500 = vmatprep.subr.bf16.mxu0 0
    %1501 = vmatpush1.bf16.msra.mxu0 %v1466
    %1502 = vmatprep.subr.bf16.mxu0 0
    %1503 = vmatpush1.bf16.msra.mxu0 %v1467
    %1504 = vmatprep.subr.bf16.mxu0 0
    %1505 = vmatpush1.bf16.msra.mxu0 %v1468
    %1506 = vmatprep.subr.bf16.mxu0 0
    %1507 = vmatpush1.bf16.msra.mxu0 %v1469
    %1508 = vmatprep.subr.bf16.mxu0 0
    %1509 = vmatpush1.bf16.msra.mxu0 %v1470
    %1510 = vmatprep.subr.bf16.mxu0 0
    %1511 = vmatpush1.bf16.msra.mxu0 %v1471
    %1512 = vmatprep.subr.bf16.mxu0 0
    %1513 = vmatpush1.bf16.msra.mxu0 %v1472
    %1514 = vmatprep.subr.bf16.mxu0 0
    %1515 = vmatpush1.bf16.msra.mxu0 %v1473
    %1516 = vmatprep.subr.bf16.mxu0 0
    %1517 = vmatpush1.bf16.msra.mxu0 %v1474
    %1518 = vmatprep.subr.bf16.mxu0 0
    %1519 = vmatpush1.bf16.msra.mxu0 %v1475
    %1520 = vmatprep.subr.bf16.mxu0 0
    %1521 = vmatpush1.bf16.msra.mxu0 %v1476
    %1522 = vmatprep.subr.bf16.mxu0 0
    %1523 = vmatpush1.bf16.msra.mxu0 %v1477
    %1524 = vmatprep.subr.bf16.mxu0 0
    %1525 = vmatpush1.bf16.msra.mxu0 %v1478
    %1526 = vmatprep.subr.bf16.mxu0 0
    %1527 = vmatpush1.bf16.msra.mxu0 %v1479
    %1528 = vmatprep.mubr.bf16.mxu0 %v1072
    %1529 = vmatmul.mubr.bf16.gmra.mrb[0].mxu0 %v1071
    %v1530 = vpop.f32.mrb[0].mxu0
    %v1531 = vadd.f32 %v1271, %v1530
    %v1532 = vpop.f32.mrb[0].mxu0
    %v1533 = vpop.f32.mrb[0].mxu0
    %v1534 = vpop.f32.mrb[0].mxu0
    %1535 = vdwg.mxu0
    %v1537 = vlaneseq
    %v1538 = vshrl.u32 %v1537, 7
    %v1539 = vsub.s32 0, %v1538
    %v1540 = vrot.slane %v1398, %v1539
    %v1542 = vadd.f32 %v1531, %v1540
    %v1543 = vxor.u32 %v1542, 2147483648
    %v1544 = vmul.f32 %v1543, 1.442695
    %v1545 = vpow.pop %v1544
    %v1546 = vadd.f32 %v1545, 1.0
    %v1547 = vrcp.pop %v1546
    %v1548 = vmul.f32 1.0, %v1547
    %v1581 = vunpack.c.l.b16 %v1106
    %v1582 = vunpack.c.l.b16 %v1107
    %v1583 = vunpack.c.l.b16 %v1108
    %v1584 = vunpack.c.l.b16 %v1109
    %v1585 = vunpack.c.l.b16 %v1110
    %v1586 = vunpack.c.l.b16 %v1111
    %v1587 = vunpack.c.l.b16 %v1112
    %v1588 = vunpack.c.l.b16 %v1113
    %v1589 = vunpack.c.l.b16 %v1114
    %v1590 = vunpack.c.l.b16 %v1115
    %v1591 = vunpack.c.l.b16 %v1116
    %v1592 = vunpack.c.l.b16 %v1117
    %v1593 = vunpack.c.l.b16 %v1118
    %v1594 = vunpack.c.l.b16 %v1119
    %v1595 = vunpack.c.l.b16 %v1120
    %v1596 = vunpack.c.l.b16 %v1121
    %v1597 = vunpack.c.l.b16 %v1122
    %v1598 = vunpack.c.l.b16 %v1123
    %v1599 = vunpack.c.l.b16 %v1124
    %v1600 = vunpack.c.l.b16 %v1125
    %v1601 = vunpack.c.l.b16 %v1126
    %v1602 = vunpack.c.l.b16 %v1127
    %v1603 = vunpack.c.l.b16 %v1128
    %v1604 = vunpack.c.l.b16 %v1129
    %v1605 = vunpack.c.l.b16 %v1130
    %v1606 = vunpack.c.l.b16 %v1131
    %v1607 = vunpack.c.l.b16 %v1132
    %v1608 = vunpack.c.l.b16 %v1133
    %v1609 = vunpack.c.l.b16 %v1134
    %v1610 = vunpack.c.l.b16 %v1135
    %v1611 = vunpack.c.l.b16 %v1136
    %v1612 = vunpack.c.l.b16 %v1137
    %v1613 = vpack.c.b16 %v1582, %v1581
    %v1614 = vpack.c.b16 %v1584, %v1583
    %v1615 = vpack.c.b16 %v1586, %v1585
    %v1616 = vpack.c.b16 %v1588, %v1587
    %v1617 = vpack.c.b16 %v1590, %v1589
    %v1618 = vpack.c.b16 %v1592, %v1591
    %v1619 = vpack.c.b16 %v1594, %v1593
    %v1620 = vpack.c.b16 %v1596, %v1595
    %v1621 = vpack.c.b16 %v1598, %v1597
    %v1622 = vpack.c.b16 %v1600, %v1599
    %v1623 = vpack.c.b16 %v1602, %v1601
    %v1624 = vpack.c.b16 %v1604, %v1603
    %v1625 = vpack.c.b16 %v1606, %v1605
    %v1626 = vpack.c.b16 %v1608, %v1607
    %v1627 = vpack.c.b16 %v1610, %v1609
    %v1628 = vpack.c.b16 %v1612, %v1611
    %1645 = vmatprep.subr.bf16.mxu0 0
    %1646 = vmatpush1.bf16.msra.mxu0 %v1613
    %1647 = vmatprep.subr.bf16.mxu0 0
    %1648 = vmatpush1.bf16.msra.mxu0 %v1614
    %1649 = vmatprep.subr.bf16.mxu0 0
    %1650 = vmatpush1.bf16.msra.mxu0 %v1615
    %1651 = vmatprep.subr.bf16.mxu0 0
    %1652 = vmatpush1.bf16.msra.mxu0 %v1616
    %1653 = vmatprep.subr.bf16.mxu0 0
    %1654 = vmatpush1.bf16.msra.mxu0 %v1617
    %1655 = vmatprep.subr.bf16.mxu0 0
    %1656 = vmatpush1.bf16.msra.mxu0 %v1618
    %1657 = vmatprep.subr.bf16.mxu0 0
    %1658 = vmatpush1.bf16.msra.mxu0 %v1619
    %1659 = vmatprep.subr.bf16.mxu0 0
    %1660 = vmatpush1.bf16.msra.mxu0 %v1620
    %1661 = vmatprep.subr.bf16.mxu0 0
    %1662 = vmatpush1.bf16.msra.mxu0 %v1621
    %1663 = vmatprep.subr.bf16.mxu0 0
    %1664 = vmatpush1.bf16.msra.mxu0 %v1622
    %1665 = vmatprep.subr.bf16.mxu0 0
    %1666 = vmatpush1.bf16.msra.mxu0 %v1623
    %1667 = vmatprep.subr.bf16.mxu0 0
    %1668 = vmatpush1.bf16.msra.mxu0 %v1624
    %1669 = vmatprep.subr.bf16.mxu0 0
    %1670 = vmatpush1.bf16.msra.mxu0 %v1625
    %1671 = vmatprep.subr.bf16.mxu0 0
    %1672 = vmatpush1.bf16.msra.mxu0 %v1626
    %1673 = vmatprep.subr.bf16.mxu0 0
    %1674 = vmatpush1.bf16.msra.mxu0 %v1627
    %1675 = vmatprep.subr.bf16.mxu0 0
    %1676 = vmatpush1.bf16.msra.mxu0 %v1628
    %1677 = vmatprep.mubr.bf16.mxu0 %v1072
    %1678 = vmatmul.mubr.bf16.gmra.mrb[0].mxu0 %v1071
    %v1679 = vpop.f32.mrb[0].mxu0
    %v1680 = vadd.f32 %v1376, %v1679
    %v1681 = vpop.f32.mrb[0].mxu0
    %v1682 = vpop.f32.mrb[0].mxu0
    %v1683 = vpop.f32.mrb[0].mxu0
    %1684 = vdwg.mxu0
    %v1686 = vlaneseq
    %v1687 = vshrl.u32 %v1686, 7
    %v1688 = vsub.s32 0, %v1687
    %v1689 = vrot.slane %v1399, %v1688
    %v1691 = vadd.f32 %v1680, %v1689
    %v1692 = vxor.u32 %v1691, 2147483648
    %v1693 = vmul.f32 %v1692, 1.442695
    %v1694 = vpow.pop %v1693
    %v1695 = vadd.f32 %v1694, 1.0
    %v1696 = vrcp.pop %v1695
    %v1697 = vmul.f32 1.0, %v1696
    %v1698 = vld [vmem:[%s12] sm:$0x1]
    %v1700 = vlaneseq
    %v1701 = vshrl.u32 %v1700, 7
    %v1702 = vsub.s32 0, %v1701
    %v1703 = vrot.slane %v1698, %v1702
    %v1737 = vunpack.c.l.b16 %v1139
    %v1738 = vunpack.c.l.b16 %v1140
    %v1739 = vunpack.c.l.b16 %v1141
    %v1740 = vunpack.c.l.b16 %v1142
    %v1741 = vunpack.c.l.b16 %v1143
    %v1742 = vunpack.c.l.b16 %v1144
    %v1743 = vunpack.c.l.b16 %v1145
    %v1744 = vunpack.c.l.b16 %v1146
    %v1745 = vunpack.c.l.b16 %v1147
    %v1746 = vunpack.c.l.b16 %v1148
    %v1747 = vunpack.c.l.b16 %v1149
    %v1748 = vunpack.c.l.b16 %v1150
    %v1749 = vunpack.c.l.b16 %v1151
    %v1750 = vunpack.c.l.b16 %v1152
    %v1751 = vunpack.c.l.b16 %v1153
    %v1752 = vunpack.c.l.b16 %v1154
    %v1753 = vunpack.c.l.b16 %v1155
    %v1754 = vunpack.c.l.b16 %v1156
    %v1755 = vunpack.c.l.b16 %v1157
    %v1756 = vunpack.c.l.b16 %v1158
    %v1757 = vunpack.c.l.b16 %v1159
    %v1758 = vunpack.c.l.b16 %v1160
    %v1759 = vunpack.c.l.b16 %v1161
    %v1760 = vunpack.c.l.b16 %v1162
    %v1761 = vunpack.c.l.b16 %v1163
    %v1762 = vunpack.c.l.b16 %v1164
    %v1763 = vunpack.c.l.b16 %v1165
    %v1764 = vunpack.c.l.b16 %v1166
    %v1765 = vunpack.c.l.b16 %v1167
    %v1766 = vunpack.c.l.b16 %v1168
    %v1767 = vunpack.c.l.b16 %v1169
    %v1768 = vunpack.c.l.b16 %v1170
    %v1769 = vpack.c.b16 %v1738, %v1737
    %v1770 = vpack.c.b16 %v1740, %v1739
    %v1771 = vpack.c.b16 %v1742, %v1741
    %v1772 = vpack.c.b16 %v1744, %v1743
    %v1773 = vpack.c.b16 %v1746, %v1745
    %v1774 = vpack.c.b16 %v1748, %v1747
    %v1775 = vpack.c.b16 %v1750, %v1749
    %v1776 = vpack.c.b16 %v1752, %v1751
    %v1777 = vpack.c.b16 %v1754, %v1753
    %v1778 = vpack.c.b16 %v1756, %v1755
    %v1779 = vpack.c.b16 %v1758, %v1757
    %v1780 = vpack.c.b16 %v1760, %v1759
    %v1781 = vpack.c.b16 %v1762, %v1761
    %v1782 = vpack.c.b16 %v1764, %v1763
    %v1783 = vpack.c.b16 %v1766, %v1765
    %v1784 = vpack.c.b16 %v1768, %v1767
    %1801 = vmatprep.subr.bf16.mxu0 0
    %1802 = vmatpush1.bf16.msra.mxu0 %v1769
    %1803 = vmatprep.subr.bf16.mxu0 0
    %1804 = vmatpush1.bf16.msra.mxu0 %v1770
    %1805 = vmatprep.subr.bf16.mxu0 0
    %1806 = vmatpush1.bf16.msra.mxu0 %v1771
    %1807 = vmatprep.subr.bf16.mxu0 0
    %1808 = vmatpush1.bf16.msra.mxu0 %v1772
    %1809 = vmatprep.subr.bf16.mxu0 0
    %1810 = vmatpush1.bf16.msra.mxu0 %v1773
    %1811 = vmatprep.subr.bf16.mxu0 0
    %1812 = vmatpush1.bf16.msra.mxu0 %v1774
    %1813 = vmatprep.subr.bf16.mxu0 0
    %1814 = vmatpush1.bf16.msra.mxu0 %v1775
    %1815 = vmatprep.subr.bf16.mxu0 0
    %1816 = vmatpush1.bf16.msra.mxu0 %v1776
    %1817 = vmatprep.subr.bf16.mxu0 0
    %1818 = vmatpush1.bf16.msra.mxu0 %v1777
    %1819 = vmatprep.subr.bf16.mxu0 0
    %1820 = vmatpush1.bf16.msra.mxu0 %v1778
    %1821 = vmatprep.subr.bf16.mxu0 0
    %1822 = vmatpush1.bf16.msra.mxu0 %v1779
    %1823 = vmatprep.subr.bf16.mxu0 0
    %1824 = vmatpush1.bf16.msra.mxu0 %v1780
    %1825 = vmatprep.subr.bf16.mxu0 0
    %1826 = vmatpush1.bf16.msra.mxu0 %v1781
    %1827 = vmatprep.subr.bf16.mxu0 0
    %1828 = vmatpush1.bf16.msra.mxu0 %v1782
    %1829 = vmatprep.subr.bf16.mxu0 0
    %1830 = vmatpush1.bf16.msra.mxu0 %v1783
    %1831 = vmatprep.subr.bf16.mxu0 0
    %1832 = vmatpush1.bf16.msra.mxu0 %v1784
    %1833 = vmatprep.mubr.bf16.mxu0 %v1072
    %1834 = vmatmul.mubr.bf16.gmra.mrb[0].mxu0 %v1071
    %v1835 = vpop.f32.mrb[0].mxu0
    %v1836 = vadd.f32 %v1703, %v1835
    %v1837 = vpop.f32.mrb[0].mxu0
    %v1838 = vpop.f32.mrb[0].mxu0
    %v1839 = vpop.f32.mrb[0].mxu0
    %1840 = vdwg.mxu0
    %v1841 = vld [vmem:[%s13] sm:$0x1]
    %v1843 = vlaneseq
    %v1844 = vshrl.u32 %v1843, 7
    %v1845 = vsub.s32 0, %v1844
    %v1846 = vrot.slane %v1841, %v1845
    %v1864 = vunpack.c.l.b16 %v1382
    %v1865 = vunpack.c.l.b16 %v1383
    %v1866 = vunpack.c.l.b16 %v1384
    %v1867 = vunpack.c.l.b16 %v1385
    %v1868 = vunpack.c.l.b16 %v1386
    %v1869 = vunpack.c.l.b16 %v1387
    %v1870 = vunpack.c.l.b16 %v1388
    %v1871 = vunpack.c.l.b16 %v1389
    %v1872 = vunpack.c.l.b16 %v1390
    %v1873 = vunpack.c.l.b16 %v1391
    %v1874 = vunpack.c.l.b16 %v1392
    %v1875 = vunpack.c.l.b16 %v1393
    %v1876 = vunpack.c.l.b16 %v1394
    %v1877 = vunpack.c.l.b16 %v1395
    %v1878 = vunpack.c.l.b16 %v1396
    %v1879 = vunpack.c.l.b16 %v1397
    %v1880 = vpack.c.b16 %v1865, %v1864
    %v1881 = vpack.c.b16 %v1867, %v1866
    %v1882 = vpack.c.b16 %v1869, %v1868
    %v1883 = vpack.c.b16 %v1871, %v1870
    %v1884 = vpack.c.b16 %v1873, %v1872
    %v1885 = vpack.c.b16 %v1875, %v1874
    %v1886 = vpack.c.b16 %v1877, %v1876
    %v1887 = vpack.c.b16 %v1879, %v1878
    %1896 = vmatprep.subr.bf16.mxu0 0
    %1897 = vmatpush1.bf16.msra.mxu0 %v1880
    %1898 = vmatprep.subr.bf16.mxu0 0
    %1899 = vmatpush1.bf16.msra.mxu0 %v1881
    %1900 = vmatprep.subr.bf16.mxu0 0
    %1901 = vmatpush1.bf16.msra.mxu0 %v1882
    %1902 = vmatprep.subr.bf16.mxu0 0
    %1903 = vmatpush1.bf16.msra.mxu0 %v1883
    %1904 = vmatprep.subr.bf16.mxu0 0
    %1905 = vmatpush1.bf16.msra.mxu0 %v1884
    %1906 = vmatprep.subr.bf16.mxu0 0
    %1907 = vmatpush1.bf16.msra.mxu0 %v1885
    %1908 = vmatprep.subr.bf16.mxu0 0
    %1909 = vmatpush1.bf16.msra.mxu0 %v1886
    %1910 = vmatprep.subr.bf16.mxu0 0
    %1911 = vmatpush1.bf16.msra.mxu0 %v1887
    %1912 = vmatprep.subr.bf16.mxu0 0
    %1913 = vmatpush1.bf16.msra.mxu0 0
    %1914 = vmatprep.subr.bf16.mxu0 0
    %1915 = vmatpush1.bf16.msra.mxu0 0
    %1916 = vmatprep.subr.bf16.mxu0 0
    %1917 = vmatpush1.bf16.msra.mxu0 0
    %1918 = vmatprep.subr.bf16.mxu0 0
    %1919 = vmatpush1.bf16.msra.mxu0 0
    %1920 = vmatprep.subr.bf16.mxu0 0
    %1921 = vmatpush1.bf16.msra.mxu0 0
    %1922 = vmatprep.subr.bf16.mxu0 0
    %1923 = vmatpush1.bf16.msra.mxu0 0
    %1924 = vmatprep.subr.bf16.mxu0 0
    %1925 = vmatpush1.bf16.msra.mxu0 0
    %1926 = vmatprep.subr.bf16.mxu0 0
    %1927 = vmatpush1.bf16.msra.mxu0 0
    %1928 = vmatprep.mubr.bf16.mxu0 0
    %1929 = vmatmul.mubr.bf16.gmra.mrb[0].mxu0 %v1171
    %v1930 = vpop.f32.mrb[0].mxu0
    %v1931 = vadd.f32 %v1846, %v1930
    %v1932 = vpop.f32.mrb[0].mxu0
    %v1933 = vpop.f32.mrb[0].mxu0
    %v1934 = vpop.f32.mrb[0].mxu0
    %1935 = vdwg.mxu0
    %v1936 = vmul.f32 %v1548, %v1931
    %v1937 = vadd.f32 %v1836, %v1936
    %v1938 = vtanh.pop %v1937
    %v1939 = vsub.f32 %v1070, %v1938
    %v1940 = vmul.f32 %v1697, %v1939
    %v1941 = vadd.f32 %v1938, %v1940
    %1942 = vst [vmem:[#allocation14] sm:$0x3] %v1941
    %v1943 = vld [vmem:[%s3] sm:$0x3]
    %v1944 = vpack.c.bf16 %v1941, %v1941
    %v1945 = vld [vmem:[%s14] sm:$0xf]
    %v1946 = vld [vmem:[%s14 + $0x4] sm:$0xf]
    %v1947 = vld [vmem:[%s14 + $0x8] sm:$0xf]
    %v1948 = vld [vmem:[%s14 + $0xc] sm:$0xf]
    %v1949 = vld [vmem:[%s14 + $0x10] sm:$0xf]
    %v1950 = vld [vmem:[%s14 + $0x14] sm:$0xf]
    %v1951 = vld [vmem:[%s14 + $0x18] sm:$0xf]
    %v1952 = vld [vmem:[%s14 + $0x1c] sm:$0xf]
    %v1953 = vld [vmem:[%s14 + $0x20] sm:$0xf]
    %v1954 = vld [vmem:[%s14 + $0x24] sm:$0xf]
    %v1955 = vld [vmem:[%s14 + $0x28] sm:$0xf]
    %v1956 = vld [vmem:[%s14 + $0x2c] sm:$0xf]
    %v1957 = vld [vmem:[%s14 + $0x30] sm:$0xf]
    %v1958 = vld [vmem:[%s14 + $0x34] sm:$0xf]
    %v1959 = vld [vmem:[%s14 + $0x38] sm:$0xf]
    %v1960 = vld [vmem:[%s14 + $0x3c] sm:$0xf]
    %s1961 = scalar_lea.vmem %s14, 64
    %v1962 = vld [vmem:[%s1961] sm:$0xf]
    %v1963 = vld [vmem:[%s1961 + $0x4] sm:$0xf]
    %v1964 = vld [vmem:[%s1961 + $0x8] sm:$0xf]
    %v1965 = vld [vmem:[%s1961 + $0xc] sm:$0xf]
    %v1966 = vld [vmem:[%s1961 + $0x10] sm:$0xf]
    %v1967 = vld [vmem:[%s1961 + $0x14] sm:$0xf]
    %v1968 = vld [vmem:[%s1961 + $0x18] sm:$0xf]
    %v1969 = vld [vmem:[%s1961 + $0x1c] sm:$0xf]
    %v1970 = vld [vmem:[%s1961 + $0x20] sm:$0xf]
    %v1971 = vld [vmem:[%s1961 + $0x24] sm:$0xf]
    %v1972 = vld [vmem:[%s1961 + $0x28] sm:$0xf]
    %v1973 = vld [vmem:[%s1961 + $0x2c] sm:$0xf]
    %v1974 = vld [vmem:[%s1961 + $0x30] sm:$0xf]
    %v1975 = vld [vmem:[%s1961 + $0x34] sm:$0xf]
    %v1976 = vld [vmem:[%s1961 + $0x38] sm:$0xf]
    %v1977 = vld [vmem:[%s1961 + $0x3c] sm:$0xf]
    %s1978 = scalar_lea.vmem %s14, 128
    %v1979 = vld [vmem:[%s1978] sm:$0xf]
    %v1980 = vld [vmem:[%s1978 + $0x4] sm:$0xf]
    %v1981 = vld [vmem:[%s1978 + $0x8] sm:$0xf]
    %v1982 = vld [vmem:[%s1978 + $0xc] sm:$0xf]
    %v1983 = vld [vmem:[%s1978 + $0x10] sm:$0xf]
    %v1984 = vld [vmem:[%s1978 + $0x14] sm:$0xf]
    %v1985 = vld [vmem:[%s1978 + $0x18] sm:$0xf]
    %v1986 = vld [vmem:[%s1978 + $0x1c] sm:$0xf]
    %v1987 = vld [vmem:[%s1978 + $0x20] sm:$0xf]
    %v1988 = vld [vmem:[%s1978 + $0x24] sm:$0xf]
    %v1989 = vld [vmem:[%s1978 + $0x28] sm:$0xf]
    %v1990 = vld [vmem:[%s1978 + $0x2c] sm:$0xf]
    %v1991 = vld [vmem:[%s1978 + $0x30] sm:$0xf]
    %v1992 = vld [vmem:[%s1978 + $0x34] sm:$0xf]
    %v1993 = vld [vmem:[%s1978 + $0x38] sm:$0xf]
    %v1994 = vld [vmem:[%s1978 + $0x3c] sm:$0xf]
    %v1995 = vpack.c.bf16 %v1943, %v1943
    %v1996 = vld [vmem:[%s15] sm:$0xf]
    %v1997 = vld [vmem:[%s15 + $0x4] sm:$0xf]
    %v1998 = vld [vmem:[%s15 + $0x8] sm:$0xf]
    %v1999 = vld [vmem:[%s15 + $0xc] sm:$0xf]
    %v2000 = vld [vmem:[%s15 + $0x10] sm:$0xf]
    %v2001 = vld [vmem:[%s15 + $0x14] sm:$0xf]
    %v2002 = vld [vmem:[%s15 + $0x18] sm:$0xf]
    %v2003 = vld [vmem:[%s15 + $0x1c] sm:$0xf]
    %v2012 = vunpack.c.l.b16 %v1996
    %v2013 = vunpack.c.l.b16 %v1997
    %v2014 = vunpack.c.l.b16 %v1998
    %v2015 = vunpack.c.l.b16 %v1999
    %v2016 = vunpack.c.l.b16 %v2000
    %v2017 = vunpack.c.l.b16 %v2001
    %v2018 = vunpack.c.l.b16 %v2002
    %v2019 = vunpack.c.l.b16 %v2003
    %v2020 = vpack.c.b16 %v2013, %v2012
    %v2021 = vpack.c.b16 %v2015, %v2014
    %v2022 = vpack.c.b16 %v2017, %v2016
    %v2023 = vpack.c.b16 %v2019, %v2018
    %vm2028 = vcmask 523264
    %v2030 = vsel %vm2028, %v1995, 0
    %2032 = vmatprep.subr.bf16.mxu0 0
    %2033 = vmatpush1.bf16.msra.mxu0 %v2020
    %2034 = vmatprep.subr.bf16.mxu0 0
    %2035 = vmatpush1.bf16.msra.mxu0 %v2021
    %2036 = vmatprep.subr.bf16.mxu0 0
    %2037 = vmatpush1.bf16.msra.mxu0 %v2022
    %2038 = vmatprep.subr.bf16.mxu0 0
    %2039 = vmatpush1.bf16.msra.mxu0 %v2023
    %2040 = vmatprep.subr.bf16.mxu0 0
    %2041 = vmatpush1.bf16.msra.mxu0 0
    %2042 = vmatprep.subr.bf16.mxu0 0
    %2043 = vmatpush1.bf16.msra.mxu0 0
    %2044 = vmatprep.subr.bf16.mxu0 0
    %2045 = vmatpush1.bf16.msra.mxu0 0
    %2046 = vmatprep.subr.bf16.mxu0 0
    %2047 = vmatpush1.bf16.msra.mxu0 0
    %2048 = vmatprep.subr.bf16.mxu0 0
    %2049 = vmatpush1.bf16.msra.mxu0 0
    %2050 = vmatprep.subr.bf16.mxu0 0
    %2051 = vmatpush1.bf16.msra.mxu0 0
    %2052 = vmatprep.subr.bf16.mxu0 0
    %2053 = vmatpush1.bf16.msra.mxu0 0
    %2054 = vmatprep.subr.bf16.mxu0 0
    %2055 = vmatpush1.bf16.msra.mxu0 0
    %2056 = vmatprep.subr.bf16.mxu0 0
    %2057 = vmatpush1.bf16.msra.mxu0 0
    %2058 = vmatprep.subr.bf16.mxu0 0
    %2059 = vmatpush1.bf16.msra.mxu0 0
    %2060 = vmatprep.subr.bf16.mxu0 0
    %2061 = vmatpush1.bf16.msra.mxu0 0
    %2062 = vmatprep.subr.bf16.mxu0 0
    %2063 = vmatpush1.bf16.msra.mxu0 0
    %2064 = vmatprep.mubr.bf16.mxu0 0
    %2065 = vmatmul.mubr.bf16.gmra.mrb[0].mxu0 %v2030
    %v2066 = vpop.f32.mrb[0].mxu0
    %v2067 = vadd.f32 0.0, %v2066
    %v2068 = vpop.f32.mrb[0].mxu0
    %v2069 = vpop.f32.mrb[0].mxu0
    %v2070 = vpop.f32.mrb[0].mxu0
    %2071 = vdwg.mxu0
    %s2072 = scalar_lea.vmem %s15, 32
    %v2073 = vld [vmem:[%s2072] sm:$0xf]
    %v2074 = vld [vmem:[%s2072 + $0x4] sm:$0xf]
    %v2075 = vld [vmem:[%s2072 + $0x8] sm:$0xf]
    %v2076 = vld [vmem:[%s2072 + $0xc] sm:$0xf]
    %v2077 = vld [vmem:[%s2072 + $0x10] sm:$0xf]
    %v2078 = vld [vmem:[%s2072 + $0x14] sm:$0xf]
    %v2079 = vld [vmem:[%s2072 + $0x18] sm:$0xf]
    %v2080 = vld [vmem:[%s2072 + $0x1c] sm:$0xf]
    %v2089 = vunpack.c.l.b16 %v2073
    %v2090 = vunpack.c.l.b16 %v2074
    %v2091 = vunpack.c.l.b16 %v2075
    %v2092 = vunpack.c.l.b16 %v2076
    %v2093 = vunpack.c.l.b16 %v2077
    %v2094 = vunpack.c.l.b16 %v2078
    %v2095 = vunpack.c.l.b16 %v2079
    %v2096 = vunpack.c.l.b16 %v2080
    %v2097 = vpack.c.b16 %v2090, %v2089
    %v2098 = vpack.c.b16 %v2092, %v2091
    %v2099 = vpack.c.b16 %v2094, %v2093
    %v2100 = vpack.c.b16 %v2096, %v2095
    %2105 = vmatprep.subr.bf16.mxu0 0
    %2106 = vmatpush1.bf16.msra.mxu0 %v2097
    %2107 = vmatprep.subr.bf16.mxu0 0
    %2108 = vmatpush1.bf16.msra.mxu0 %v2098
    %2109 = vmatprep.subr.bf16.mxu0 0
    %2110 = vmatpush1.bf16.msra.mxu0 %v2099
    %2111 = vmatprep.subr.bf16.mxu0 0
    %2112 = vmatpush1.bf16.msra.mxu0 %v2100
    %2113 = vmatprep.subr.bf16.mxu0 0
    %2114 = vmatpush1.bf16.msra.mxu0 0
    %2115 = vmatprep.subr.bf16.mxu0 0
    %2116 = vmatpush1.bf16.msra.mxu0 0
    %2117 = vmatprep.subr.bf16.mxu0 0
    %2118 = vmatpush1.bf16.msra.mxu0 0
    %2119 = vmatprep.subr.bf16.mxu0 0
    %2120 = vmatpush1.bf16.msra.mxu0 0
    %2121 = vmatprep.subr.bf16.mxu0 0
    %2122 = vmatpush1.bf16.msra.mxu0 0
    %2123 = vmatprep.subr.bf16.mxu0 0
    %2124 = vmatpush1.bf16.msra.mxu0 0
    %2125 = vmatprep.subr.bf16.mxu0 0
    %2126 = vmatpush1.bf16.msra.mxu0 0
    %2127 = vmatprep.subr.bf16.mxu0 0
    %2128 = vmatpush1.bf16.msra.mxu0 0
    %2129 = vmatprep.subr.bf16.mxu0 0
    %2130 = vmatpush1.bf16.msra.mxu0 0
    %2131 = vmatprep.subr.bf16.mxu0 0
    %2132 = vmatpush1.bf16.msra.mxu0 0
    %2133 = vmatprep.subr.bf16.mxu0 0
    %2134 = vmatpush1.bf16.msra.mxu0 0
    %2135 = vmatprep.subr.bf16.mxu0 0
    %2136 = vmatpush1.bf16.msra.mxu0 0
    %2137 = vmatprep.mubr.bf16.mxu0 0
    %2138 = vmatmul.mubr.bf16.gmra.mrb[0].mxu0 %v2030
    %v2139 = vpop.f32.mrb[0].mxu0
    %v2140 = vadd.f32 0.0, %v2139
    %v2141 = vpop.f32.mrb[0].mxu0
    %v2142 = vpop.f32.mrb[0].mxu0
    %v2143 = vpop.f32.mrb[0].mxu0
    %2144 = vdwg.mxu0
    %s2145 = scalar_lea.vmem %s15, 64
    %v2146 = vld [vmem:[%s2145] sm:$0xf]
    %v2147 = vld [vmem:[%s2145 + $0x4] sm:$0xf]
    %v2148 = vld [vmem:[%s2145 + $0x8] sm:$0xf]
    %v2149 = vld [vmem:[%s2145 + $0xc] sm:$0xf]
    %v2150 = vld [vmem:[%s2145 + $0x10] sm:$0xf]
    %v2151 = vld [vmem:[%s2145 + $0x14] sm:$0xf]
    %v2152 = vld [vmem:[%s2145 + $0x18] sm:$0xf]
    %v2153 = vld [vmem:[%s2145 + $0x1c] sm:$0xf]
    %v2154 = vld [vmem:[%s16] sm:$0x1]
    %v2155 = vld [vmem:[%s16 + $0x1] sm:$0x1]
    %v2172 = vunpack.c.l.b16 %v1945
    %v2173 = vunpack.c.l.b16 %v1946
    %v2174 = vunpack.c.l.b16 %v1947
    %v2175 = vunpack.c.l.b16 %v1948
    %v2176 = vunpack.c.l.b16 %v1949
    %v2177 = vunpack.c.l.b16 %v1950
    %v2178 = vunpack.c.l.b16 %v1951
    %v2179 = vunpack.c.l.b16 %v1952
    %v2180 = vunpack.c.l.b16 %v1953
    %v2181 = vunpack.c.l.b16 %v1954
    %v2182 = vunpack.c.l.b16 %v1955
    %v2183 = vunpack.c.l.b16 %v1956
    %v2184 = vunpack.c.l.b16 %v1957
    %v2185 = vunpack.c.l.b16 %v1958
    %v2186 = vunpack.c.l.b16 %v1959
    %v2187 = vunpack.c.l.b16 %v1960
    %v2188 = vpack.c.b16 %v2173, %v2172
    %v2189 = vpack.c.b16 %v2175, %v2174
    %v2190 = vpack.c.b16 %v2177, %v2176
    %v2191 = vpack.c.b16 %v2179, %v2178
    %v2192 = vpack.c.b16 %v2181, %v2180
    %v2193 = vpack.c.b16 %v2183, %v2182
    %v2194 = vpack.c.b16 %v2185, %v2184
    %v2195 = vpack.c.b16 %v2187, %v2186
    %2204 = vmatprep.subr.bf16.mxu0 0
    %2205 = vmatpush1.bf16.msra.mxu0 %v2188
    %2206 = vmatprep.subr.bf16.mxu0 0
    %2207 = vmatpush1.bf16.msra.mxu0 %v2189
    %2208 = vmatprep.subr.bf16.mxu0 0
    %2209 = vmatpush1.bf16.msra.mxu0 %v2190
    %2210 = vmatprep.subr.bf16.mxu0 0
    %2211 = vmatpush1.bf16.msra.mxu0 %v2191
    %2212 = vmatprep.subr.bf16.mxu0 0
    %2213 = vmatpush1.bf16.msra.mxu0 %v2192
    %2214 = vmatprep.subr.bf16.mxu0 0
    %2215 = vmatpush1.bf16.msra.mxu0 %v2193
    %2216 = vmatprep.subr.bf16.mxu0 0
    %2217 = vmatpush1.bf16.msra.mxu0 %v2194
    %2218 = vmatprep.subr.bf16.mxu0 0
    %2219 = vmatpush1.bf16.msra.mxu0 %v2195
    %2220 = vmatprep.subr.bf16.mxu0 0
    %2221 = vmatpush1.bf16.msra.mxu0 0
    %2222 = vmatprep.subr.bf16.mxu0 0
    %2223 = vmatpush1.bf16.msra.mxu0 0
    %2224 = vmatprep.subr.bf16.mxu0 0
    %2225 = vmatpush1.bf16.msra.mxu0 0
    %2226 = vmatprep.subr.bf16.mxu0 0
    %2227 = vmatpush1.bf16.msra.mxu0 0
    %2228 = vmatprep.subr.bf16.mxu0 0
    %2229 = vmatpush1.bf16.msra.mxu0 0
    %2230 = vmatprep.subr.bf16.mxu0 0
    %2231 = vmatpush1.bf16.msra.mxu0 0
    %2232 = vmatprep.subr.bf16.mxu0 0
    %2233 = vmatpush1.bf16.msra.mxu0 0
    %2234 = vmatprep.subr.bf16.mxu0 0
    %2235 = vmatpush1.bf16.msra.mxu0 0
    %2236 = vmatprep.mubr.bf16.mxu0 0
    %2237 = vmatmul.mubr.bf16.gmra.mrb[0].mxu0 %v1944
    %v2238 = vpop.f32.mrb[0].mxu0
    %v2239 = vadd.f32 %v2067, %v2238
    %v2240 = vpop.f32.mrb[0].mxu0
    %v2241 = vpop.f32.mrb[0].mxu0
    %v2242 = vpop.f32.mrb[0].mxu0
    %2243 = vdwg.mxu0
    %v2245 = vlaneseq
    %v2246 = vshrl.u32 %v2245, 7
    %v2247 = vsub.s32 0, %v2246
    %v2248 = vrot.slane %v2154, %v2247
    %v2250 = vadd.f32 %v2239, %v2248
    %v2251 = vxor.u32 %v2250, 2147483648
    %v2252 = vmul.f32 %v2251, 1.442695
    %v2253 = vpow.pop %v2252
    %v2254 = vadd.f32 %v2253, 1.0
    %v2255 = vrcp.pop %v2254
    %v2256 = vmul.f32 1.0, %v2255
    %v2273 = vunpack.c.l.b16 %v1962
    %v2274 = vunpack.c.l.b16 %v1963
    %v2275 = vunpack.c.l.b16 %v1964
    %v2276 = vunpack.c.l.b16 %v1965
    %v2277 = vunpack.c.l.b16 %v1966
    %v2278 = vunpack.c.l.b16 %v1967
    %v2279 = vunpack.c.l.b16 %v1968
    %v2280 = vunpack.c.l.b16 %v1969
    %v2281 = vunpack.c.l.b16 %v1970
    %v2282 = vunpack.c.l.b16 %v1971
    %v2283 = vunpack.c.l.b16 %v1972
    %v2284 = vunpack.c.l.b16 %v1973
    %v2285 = vunpack.c.l.b16 %v1974
    %v2286 = vunpack.c.l.b16 %v1975
    %v2287 = vunpack.c.l.b16 %v1976
    %v2288 = vunpack.c.l.b16 %v1977
    %v2289 = vpack.c.b16 %v2274, %v2273
    %v2290 = vpack.c.b16 %v2276, %v2275
    %v2291 = vpack.c.b16 %v2278, %v2277
    %v2292 = vpack.c.b16 %v2280, %v2279
    %v2293 = vpack.c.b16 %v2282, %v2281
    %v2294 = vpack.c.b16 %v2284, %v2283
    %v2295 = vpack.c.b16 %v2286, %v2285
    %v2296 = vpack.c.b16 %v2288, %v2287
    %2305 = vmatprep.subr.bf16.mxu0 0
    %2306 = vmatpush1.bf16.msra.mxu0 %v2289
    %2307 = vmatprep.subr.bf16.mxu0 0
    %2308 = vmatpush1.bf16.msra.mxu0 %v2290
    %2309 = vmatprep.subr.bf16.mxu0 0
    %2310 = vmatpush1.bf16.msra.mxu0 %v2291
    %2311 = vmatprep.subr.bf16.mxu0 0
    %2312 = vmatpush1.bf16.msra.mxu0 %v2292
    %2313 = vmatprep.subr.bf16.mxu0 0
    %2314 = vmatpush1.bf16.msra.mxu0 %v2293
    %2315 = vmatprep.subr.bf16.mxu0 0
    %2316 = vmatpush1.bf16.msra.mxu0 %v2294
    %2317 = vmatprep.subr.bf16.mxu0 0
    %2318 = vmatpush1.bf16.msra.mxu0 %v2295
    %2319 = vmatprep.subr.bf16.mxu0 0
    %2320 = vmatpush1.bf16.msra.mxu0 %v2296
    %2321 = vmatprep.subr.bf16.mxu0 0
    %2322 = vmatpush1.bf16.msra.mxu0 0
    %2323 = vmatprep.subr.bf16.mxu0 0
    %2324 = vmatpush1.bf16.msra.mxu0 0
    %2325 = vmatprep.subr.bf16.mxu0 0
    %2326 = vmatpush1.bf16.msra.mxu0 0
    %2327 = vmatprep.subr.bf16.mxu0 0
    %2328 = vmatpush1.bf16.msra.mxu0 0
    %2329 = vmatprep.subr.bf16.mxu0 0
    %2330 = vmatpush1.bf16.msra.mxu0 0
    %2331 = vmatprep.subr.bf16.mxu0 0
    %2332 = vmatpush1.bf16.msra.mxu0 0
    %2333 = vmatprep.subr.bf16.mxu0 0
    %2334 = vmatpush1.bf16.msra.mxu0 0
    %2335 = vmatprep.subr.bf16.mxu0 0
    %2336 = vmatpush1.bf16.msra.mxu0 0
    %2337 = vmatprep.mubr.bf16.mxu0 0
    %2338 = vmatmul.mubr.bf16.gmra.mrb[0].mxu0 %v1944
    %v2339 = vpop.f32.mrb[0].mxu0
    %v2340 = vadd.f32 %v2140, %v2339
    %v2341 = vpop.f32.mrb[0].mxu0
    %v2342 = vpop.f32.mrb[0].mxu0
    %v2343 = vpop.f32.mrb[0].mxu0
    %2344 = vdwg.mxu0
    %v2346 = vlaneseq
    %v2347 = vshrl.u32 %v2346, 7
    %v2348 = vsub.s32 0, %v2347
    %v2349 = vrot.slane %v2155, %v2348
    %v2351 = vadd.f32 %v2340, %v2349
    %v2352 = vxor.u32 %v2351, 2147483648
    %v2353 = vmul.f32 %v2352, 1.442695
    %v2354 = vpow.pop %v2353
    %v2355 = vadd.f32 %v2354, 1.0
    %v2356 = vrcp.pop %v2355
    %v2357 = vmul.f32 1.0, %v2356
    %v2358 = vld [vmem:[%s17] sm:$0x1]
    %v2360 = vlaneseq
    %v2361 = vshrl.u32 %v2360, 7
    %v2362 = vsub.s32 0, %v2361
    %v2363 = vrot.slane %v2358, %v2362
    %v2381 = vunpack.c.l.b16 %v1979
    %v2382 = vunpack.c.l.b16 %v1980
    %v2383 = vunpack.c.l.b16 %v1981
    %v2384 = vunpack.c.l.b16 %v1982
    %v2385 = vunpack.c.l.b16 %v1983
    %v2386 = vunpack.c.l.b16 %v1984
    %v2387 = vunpack.c.l.b16 %v1985
    %v2388 = vunpack.c.l.b16 %v1986
    %v2389 = vunpack.c.l.b16 %v1987
    %v2390 = vunpack.c.l.b16 %v1988
    %v2391 = vunpack.c.l.b16 %v1989
    %v2392 = vunpack.c.l.b16 %v1990
    %v2393 = vunpack.c.l.b16 %v1991
    %v2394 = vunpack.c.l.b16 %v1992
    %v2395 = vunpack.c.l.b16 %v1993
    %v2396 = vunpack.c.l.b16 %v1994
    %v2397 = vpack.c.b16 %v2382, %v2381
    %v2398 = vpack.c.b16 %v2384, %v2383
    %v2399 = vpack.c.b16 %v2386, %v2385
    %v2400 = vpack.c.b16 %v2388, %v2387
    %v2401 = vpack.c.b16 %v2390, %v2389
    %v2402 = vpack.c.b16 %v2392, %v2391
    %v2403 = vpack.c.b16 %v2394, %v2393
    %v2404 = vpack.c.b16 %v2396, %v2395
    %2413 = vmatprep.subr.bf16.mxu0 0
    %2414 = vmatpush1.bf16.msra.mxu0 %v2397
    %2415 = vmatprep.subr.bf16.mxu0 0
    %2416 = vmatpush1.bf16.msra.mxu0 %v2398
    %2417 = vmatprep.subr.bf16.mxu0 0
    %2418 = vmatpush1.bf16.msra.mxu0 %v2399
    %2419 = vmatprep.subr.bf16.mxu0 0
    %2420 = vmatpush1.bf16.msra.mxu0 %v2400
    %2421 = vmatprep.subr.bf16.mxu0 0
    %2422 = vmatpush1.bf16.msra.mxu0 %v2401
    %2423 = vmatprep.subr.bf16.mxu0 0
    %2424 = vmatpush1.bf16.msra.mxu0 %v2402
    %2425 = vmatprep.subr.bf16.mxu0 0
    %2426 = vmatpush1.bf16.msra.mxu0 %v2403
    %2427 = vmatprep.subr.bf16.mxu0 0
    %2428 = vmatpush1.bf16.msra.mxu0 %v2404
    %2429 = vmatprep.subr.bf16.mxu0 0
    %2430 = vmatpush1.bf16.msra.mxu0 0
    %2431 = vmatprep.subr.bf16.mxu0 0
    %2432 = vmatpush1.bf16.msra.mxu0 0
    %2433 = vmatprep.subr.bf16.mxu0 0
    %2434 = vmatpush1.bf16.msra.mxu0 0
    %2435 = vmatprep.subr.bf16.mxu0 0
    %2436 = vmatpush1.bf16.msra.mxu0 0
    %2437 = vmatprep.subr.bf16.mxu0 0
    %2438 = vmatpush1.bf16.msra.mxu0 0
    %2439 = vmatprep.subr.bf16.mxu0 0
    %2440 = vmatpush1.bf16.msra.mxu0 0
    %2441 = vmatprep.subr.bf16.mxu0 0
    %2442 = vmatpush1.bf16.msra.mxu0 0
    %2443 = vmatprep.subr.bf16.mxu0 0
    %2444 = vmatpush1.bf16.msra.mxu0 0
    %2445 = vmatprep.mubr.bf16.mxu0 0
    %2446 = vmatmul.mubr.bf16.gmra.mrb[0].mxu0 %v1944
    %v2447 = vpop.f32.mrb[0].mxu0
    %v2448 = vadd.f32 %v2363, %v2447
    %v2449 = vpop.f32.mrb[0].mxu0
    %v2450 = vpop.f32.mrb[0].mxu0
    %v2451 = vpop.f32.mrb[0].mxu0
    %2452 = vdwg.mxu0
    %v2453 = vld [vmem:[%s18] sm:$0x1]
    %v2455 = vlaneseq
    %v2456 = vshrl.u32 %v2455, 7
    %v2457 = vsub.s32 0, %v2456
    %v2458 = vrot.slane %v2453, %v2457
    %v2468 = vunpack.c.l.b16 %v2146
    %v2469 = vunpack.c.l.b16 %v2147
    %v2470 = vunpack.c.l.b16 %v2148
    %v2471 = vunpack.c.l.b16 %v2149
    %v2472 = vunpack.c.l.b16 %v2150
    %v2473 = vunpack.c.l.b16 %v2151
    %v2474 = vunpack.c.l.b16 %v2152
    %v2475 = vunpack.c.l.b16 %v2153
    %v2476 = vpack.c.b16 %v2469, %v2468
    %v2477 = vpack.c.b16 %v2471, %v2470
    %v2478 = vpack.c.b16 %v2473, %v2472
    %v2479 = vpack.c.b16 %v2475, %v2474
    %2484 = vmatprep.subr.bf16.mxu0 0
    %2485 = vmatpush1.bf16.msra.mxu0 %v2476
    %2486 = vmatprep.subr.bf16.mxu0 0
    %2487 = vmatpush1.bf16.msra.mxu0 %v2477
    %2488 = vmatprep.subr.bf16.mxu0 0
    %2489 = vmatpush1.bf16.msra.mxu0 %v2478
    %2490 = vmatprep.subr.bf16.mxu0 0
    %2491 = vmatpush1.bf16.msra.mxu0 %v2479
    %2492 = vmatprep.subr.bf16.mxu0 0
    %2493 = vmatpush1.bf16.msra.mxu0 0
    %2494 = vmatprep.subr.bf16.mxu0 0
    %2495 = vmatpush1.bf16.msra.mxu0 0
    %2496 = vmatprep.subr.bf16.mxu0 0
    %2497 = vmatpush1.bf16.msra.mxu0 0
    %2498 = vmatprep.subr.bf16.mxu0 0
    %2499 = vmatpush1.bf16.msra.mxu0 0
    %2500 = vmatprep.subr.bf16.mxu0 0
    %2501 = vmatpush1.bf16.msra.mxu0 0
    %2502 = vmatprep.subr.bf16.mxu0 0
    %2503 = vmatpush1.bf16.msra.mxu0 0
    %2504 = vmatprep.subr.bf16.mxu0 0
    %2505 = vmatpush1.bf16.msra.mxu0 0
    %2506 = vmatprep.subr.bf16.mxu0 0
    %2507 = vmatpush1.bf16.msra.mxu0 0
    %2508 = vmatprep.subr.bf16.mxu0 0
    %2509 = vmatpush1.bf16.msra.mxu0 0
    %2510 = vmatprep.subr.bf16.mxu0 0
    %2511 = vmatpush1.bf16.msra.mxu0 0
    %2512 = vmatprep.subr.bf16.mxu0 0
    %2513 = vmatpush1.bf16.msra.mxu0 0
    %2514 = vmatprep.subr.bf16.mxu0 0
    %2515 = vmatpush1.bf16.msra.mxu0 0
    %2516 = vmatprep.mubr.bf16.mxu0 0
    %2517 = vmatmul.mubr.bf16.gmra.mrb[0].mxu0 %v2030
    %v2518 = vpop.f32.mrb[0].mxu0
    %v2519 = vadd.f32 %v2458, %v2518
    %v2520 = vpop.f32.mrb[0].mxu0
    %v2521 = vpop.f32.mrb[0].mxu0
    %v2522 = vpop.f32.mrb[0].mxu0
    %2523 = vdwg.mxu0
    %v2524 = vmul.f32 %v2256, %v2519
    %v2525 = vadd.f32 %v2448, %v2524
    %v2526 = vtanh.pop %v2525
    %v2527 = vsub.f32 %v1943, %v2526
    %v2528 = vmul.f32 %v2357, %v2527
    %v2529 = vadd.f32 %v2526, %v2528
    %vm2530 = vcmask 517120
    %2531 = vst.msk [vmem:[#allocation16] sm:$0x3] %vm2530, %v2529
    %v2532 = vpack.c.bf16 %v2529, %v2529
    %v2533 = vld [vmem:[%s19] sm:$0xf]
    %v2534 = vld [vmem:[%s19 + $0x4] sm:$0xf]
    %v2535 = vld [vmem:[%s19 + $0x8] sm:$0xf]
    %v2536 = vld [vmem:[%s19 + $0xc] sm:$0xf]
    %v2537 = vld [vmem:[%s19 + $0x10] sm:$0xf]
    %v2538 = vld [vmem:[%s19 + $0x14] sm:$0xf]
    %v2539 = vld [vmem:[%s19 + $0x18] sm:$0xf]
    %v2540 = vld [vmem:[%s19 + $0x1c] sm:$0xf]
    %v2541 = vld [vmem:[%s20] sm:$0x1]
    %v2543 = vlaneseq
    %v2544 = vshrl.u32 %v2543, 7
    %v2545 = vsub.s32 0, %v2544
    %v2546 = vrot.slane %v2541, %v2545
    %v2556 = vunpack.c.l.b16 %v2533
    %v2557 = vunpack.c.l.b16 %v2534
    %v2558 = vunpack.c.l.b16 %v2535
    %v2559 = vunpack.c.l.b16 %v2536
    %v2560 = vunpack.c.l.b16 %v2537
    %v2561 = vunpack.c.l.b16 %v2538
    %v2562 = vunpack.c.l.b16 %v2539
    %v2563 = vunpack.c.l.b16 %v2540
    %v2564 = vpack.c.b16 %v2557, %v2556
    %v2565 = vpack.c.b16 %v2559, %v2558
    %v2566 = vpack.c.b16 %v2561, %v2560
    %v2567 = vpack.c.b16 %v2563, %v2562
    %v2573 = vsel %vm2028, %v2532, 0
    %2575 = vmatprep.subr.bf16.mxu0 0
    %2576 = vmatpush1.bf16.msra.mxu0 %v2564
    %2577 = vmatprep.subr.bf16.mxu0 0
    %2578 = vmatpush1.bf16.msra.mxu0 %v2565
    %2579 = vmatprep.subr.bf16.mxu0 0
    %2580 = vmatpush1.bf16.msra.mxu0 %v2566
    %2581 = vmatprep.subr.bf16.mxu0 0
    %2582 = vmatpush1.bf16.msra.mxu0 %v2567
    %2583 = vmatprep.subr.bf16.mxu0 0
    %2584 = vmatpush1.bf16.msra.mxu0 0
    %2585 = vmatprep.subr.bf16.mxu0 0
    %2586 = vmatpush1.bf16.msra.mxu0 0
    %2587 = vmatprep.subr.bf16.mxu0 0
    %2588 = vmatpush1.bf16.msra.mxu0 0
    %2589 = vmatprep.subr.bf16.mxu0 0
    %2590 = vmatpush1.bf16.msra.mxu0 0
    %2591 = vmatprep.subr.bf16.mxu0 0
    %2592 = vmatpush1.bf16.msra.mxu0 0
    %2593 = vmatprep.subr.bf16.mxu0 0
    %2594 = vmatpush1.bf16.msra.mxu0 0
    %2595 = vmatprep.subr.bf16.mxu0 0
    %2596 = vmatpush1.bf16.msra.mxu0 0
    %2597 = vmatprep.subr.bf16.mxu0 0
    %2598 = vmatpush1.bf16.msra.mxu0 0
    %2599 = vmatprep.subr.bf16.mxu0 0
    %2600 = vmatpush1.bf16.msra.mxu0 0
    %2601 = vmatprep.subr.bf16.mxu0 0
    %2602 = vmatpush1.bf16.msra.mxu0 0
    %2603 = vmatprep.subr.bf16.mxu0 0
    %2604 = vmatpush1.bf16.msra.mxu0 0
    %2605 = vmatprep.subr.bf16.mxu0 0
    %2606 = vmatpush1.bf16.msra.mxu0 0
    %2607 = vmatprep.mubr.bf16.mxu0 0
    %2608 = vmatmul.mubr.bf16.gmra.mrb[0].mxu0 %v2573
    %v2609 = vpop.f32.mrb[0].mxu0
    %v2610 = vadd.f32 %v2546, %v2609
    %v2611 = vpop.f32.mrb[0].mxu0
    %v2612 = vpop.f32.mrb[0].mxu0
    %v2613 = vpop.f32.mrb[0].mxu0
    %2614 = vdwg.mxu0
    %v2615 = vtanh.pop %v2610
    %2616 = vst [vmem:[%s21] sm:$0x3] %v2615
    // Predicated region
    $region110: #{custom_gru_forward.1} parent=1 // pred_check
      _
    $region111: #{custom_gru_forward.1} parent=1 // pred_check_branch
      %2618 = sbr.rel (0) target = $region113
    $region112: #{custom_gru_forward.1} parent=1 // pred_region
      _
    $region113: #{custom_gru_forward.1} parent=1 // pred_fallthru
      _
    // Predicated region
    $region114: #{custom_gru_forward.1} parent=1 // pred_check
      _
    $region115: #{custom_gru_forward.1} parent=1 // pred_check_branch
      %2620 = sbr.rel (0) target = $region117
    $region116: #{custom_gru_forward.1} parent=1 // pred_region
      %s2622 = ssub.s32 64, 64
      %2623 = vsyncadd [#allocation4], %s2622
      %s2625 = sshll.u32 [#allocation13], 4
      %s2626 = int_to_ptr.vmem [resolvable:$true] %s2625
      %2628 = dma.vmem_to_hbm [thread:$0]  %s2626, 64, %s22, [#allocation4]
    $region117: #{custom_gru_forward.1} parent=1 // pred_fallthru
      _
    // Predicated region
    $region118: #{custom_gru_forward.1} parent=1 // pred_check
      _
    $region119: #{custom_gru_forward.1} parent=1 // pred_check_branch
      %2630 = sbr.rel (0) target = $region121
    $region120: #{custom_gru_forward.1} parent=1 // pred_region
      %s2632 = ssub.s32 32, 32
      %2633 = vsyncadd [#allocation15], %s2632
      %s2635 = sshll.u32 [#allocation14], 4
      %s2636 = int_to_ptr.vmem [resolvable:$true] %s2635
      %2638 = dma.vmem_to_hbm [thread:$0]  %s2636, 32, %s23, [#allocation15]
    $region121: #{custom_gru_forward.1} parent=1 // pred_fallthru
      _
    // Predicated region
    $region122: #{custom_gru_forward.1} parent=1 // pred_check
      _
    $region123: #{custom_gru_forward.1} parent=1 // pred_check_branch
      %2640 = sbr.rel (0) target = $region125
    $region124: #{custom_gru_forward.1} parent=1 // pred_region
      %s2642 = ssub.s32 32, 32
      %2643 = vsyncadd [#allocation15], %s2642
      %s2645 = sshll.u32 [#allocation16], 4
      %s2646 = int_to_ptr.vmem [resolvable:$true] %s2645
      %2648 = dma.vmem_to_hbm [thread:$0]  %s2646, 32, %s24, [#allocation15]
    $region125: #{custom_gru_forward.1} parent=1 // pred_fallthru
      _
    // Predicated region
    $region126: #{custom_gru_forward.1} parent=1 // pred_check
      _
    $region127: #{custom_gru_forward.1} parent=1 // pred_check_branch
      %2650 = sbr.rel (0) target = $region129
    $region128: #{custom_gru_forward.1} parent=1 // pred_region
      _
    $region129: #{custom_gru_forward.1} parent=1 // pred_fallthru
      _
    // Predicated region
    $region130: #{custom_gru_forward.1} parent=1 // pred_check
      _
    $region131: #{custom_gru_forward.1} parent=1 // pred_check_branch
      %2652 = sbr.rel (0) target = $region133
    $region132: #{custom_gru_forward.1} parent=1 // pred_region
      %2653 = dma.done [#allocation4], 64
    $region133: #{custom_gru_forward.1} parent=1 // pred_fallthru
      _
    // Predicated region
    $region134: #{custom_gru_forward.1} parent=1 // pred_check
      _
    $region135: #{custom_gru_forward.1} parent=1 // pred_check_branch
      %2655 = sbr.rel (0) target = $region137
    $region136: #{custom_gru_forward.1} parent=1 // pred_region
      %2656 = dma.done [#allocation15], 32
    $region137: #{custom_gru_forward.1} parent=1 // pred_fallthru
      _
    // Predicated region
    $region138: #{custom_gru_forward.1} parent=1 // pred_check
      _
    $region139: #{custom_gru_forward.1} parent=1 // pred_check_branch
      %2658 = sbr.rel (0) target = $region141
    $region140: #{custom_gru_forward.1} parent=1 // pred_region
      %2659 = dma.done [#allocation15], 32
    $region141: #{custom_gru_forward.1} parent=1 // pred_fallthru
      _
    %2660 = vsyncpa [#allocation3], 1
    %2661 = vsyncpa [#allocation6], 1
    %2662 = vsyncpa [#allocation9], 1
    %2663 = vsyncpa [#allocation12], 1
    %2664 = vsyncpa [#allocation4], 1
    %2665 = vsyncpa [#allocation15], 1

</llo_original>
